<compile_context>
chip_gen: v7x
topology: tpu7x:2x2x1
jax: 0.10.0
libtpu: 0.0.40
codegen_flags: <defaults>
</compile_context>

<pallas_src>
import jax
import jax.numpy as jnp
from jax.experimental import pallas as pl
from jax.experimental.pallas import tpu as pltpu

LANE = 128              # TPU lane width; hidden dim (and fc3 matmul width) padded to this
HIDDEN = 64             # logical QNetwork hidden size (nn.Linear(., 64))
MIN_PALLAS_BATCH = 256  # TODO(synk): re-benchmark Pallas-vs-fused-XLA crossover with xprof (review suggests it may be higher)
MAX_TILE_B = 4096       # cap on batch-tile rows; keeps per-step VMEM to a few MiB


def _round_up(x, m):
    return (x + m - 1) // m * m


def qnet_kernel(x_ref, w1_ref, b1_ref, w2_ref, b2_ref, w3_ref, b3_ref, o_ref):
    # fc1 -> relu : bf16 matmul on the MXU, f32 accumulate / bias-add / relu
    x = x_ref[...].astype(jnp.bfloat16)
    h1 = jnp.dot(x, w1_ref[...], preferred_element_type=jnp.float32) + b1_ref[...]
    h1 = jnp.maximum(h1, 0.0).astype(jnp.bfloat16)
    # fc2 -> relu
    h2 = jnp.dot(h1, w2_ref[...], preferred_element_type=jnp.float32) + b2_ref[...]
    h2 = jnp.maximum(h2, 0.0).astype(jnp.bfloat16)
    # fc3 : lane-padded matmul, but only the real action columns are stored,
    # so the HBM writeback is (tile_b, action_size) instead of (tile_b, 128).
    q = jnp.dot(h2, w3_ref[...], preferred_element_type=jnp.float32) + b3_ref[...]
    o_ref[...] = q[:, : o_ref.shape[-1]]


def _pad_params(params):
    """Zero-pad hidden/action dims to LANE; bf16 weights, f32 biases."""
    w1, b1 = params["w1"], params["b1"]
    w2, b2 = params["w2"], params["b2"]
    w3, b3 = params["w3"], params["b3"]
    h = w1.shape[1]
    a = w3.shape[1]
    hp = _round_up(h, LANE)
    ap = _round_up(a, LANE)
    w1p = jnp.pad(w1, ((0, 0), (0, hp - h))).astype(jnp.bfloat16)
    b1p = jnp.pad(b1, ((0, 0), (0, hp - h))).astype(jnp.float32)
    w2p = jnp.pad(w2, ((0, hp - h), (0, hp - h))).astype(jnp.bfloat16)
    b2p = jnp.pad(b2, ((0, 0), (0, hp - h))).astype(jnp.float32)
    w3p = jnp.pad(w3, ((0, hp - h), (0, ap - a))).astype(jnp.bfloat16)
    b3p = jnp.pad(b3, ((0, 0), (0, ap - a))).astype(jnp.float32)
    return w1p, b1p, w2p, b2p, w3p, b3p, hp, ap


def _mlp_bf16(x, p):
    """Pure-JAX forward mirroring the kernel numerics (bf16 matmul, f32 accumulate).

    Used both as the small-batch fallback and as the correctness reference, so
    numerics are identical on both sides of MIN_PALLAS_BATCH.
    """
    c = lambda a: a.astype(jnp.bfloat16)
    h1 = jnp.maximum(
        jnp.dot(c(x), c(p["w1"]), preferred_element_type=jnp.float32) + p["b1"], 0.0)
    h2 = jnp.maximum(
        jnp.dot(c(h1), c(p["w2"]), preferred_element_type=jnp.float32) + p["b2"], 0.0)
    return jnp.dot(c(h2), c(p["w3"]), preferred_element_type=jnp.float32) + p["b3"]


def _choose_batch_tiling(B):
    """Few, large batch tiles; even tile count for large batches (v7x's 2 TCs)."""
    bp = _round_up(B, 8)
    if bp < 1024:
        n_tiles = 1                                   # one step: amortize per-step overhead
    else:
        n_tiles = 2 * max(1, pl.cdiv(bp, 2 * MAX_TILE_B))  # even count, tiles <= MAX_TILE_B
    tile_b = _round_up(pl.cdiv(bp, n_tiles), 8)
    return tile_b, tile_b * n_tiles, n_tiles


@jax.jit
def qnetwork_forward(state, params):
    """QNetwork forward: relu(fc1) -> relu(fc2) -> fc3.

    state:  (B, state_size) float32
    params: dict of f32 weights stored (in, out) and biases (1, out)
            (transposed from PyTorch nn.Linear's (out, in) storage).
    Returns (B, action_size) float32 Q-values.
    """
    B, S = state.shape
    A = params["w3"].shape[1]

    if B < MIN_PALLAS_BATCH:
        # Action-selection sized batches: let XLA fuse the whole 3-layer MLP.
        return _mlp_bf16(state, params)

    w1p, b1p, w2p, b2p, w3p, b3p, hp, ap = _pad_params(params)

    tile_b, bp, n_tiles = _choose_batch_tiling(B)
    if bp != B:
        state = jnp.pad(state, ((0, bp - B), (0, 0)))

    flops = 2 * bp * (S * hp + hp * hp + hp * ap)
    bytes_accessed = (
        bp * S * 4 + bp * A * 4                      # f32 input + narrow f32 output
        + 2 * (S * hp + hp * hp + hp * ap)           # bf16 weights (DMA'd once)
        + 4 * (hp + hp + ap)                         # f32 biases
    )

    const = lambda i: (0, 0)  # weights / biases: DMA'd once, VMEM-resident across steps
    out = pl.pallas_call(
        qnet_kernel,
        out_shape=jax.ShapeDtypeStruct((bp, A), jnp.float32),
        grid=(n_tiles,),
        in_specs=[
            pl.BlockSpec((tile_b, S), lambda i: (i, 0)),  # batch-tiled activations
            pl.BlockSpec((S, hp), const),
            pl.BlockSpec((1, hp), const),
            pl.BlockSpec((hp, hp), const),
            pl.BlockSpec((1, hp), const),
            pl.BlockSpec((hp, ap), const),
            pl.BlockSpec((1, ap), const),
        ],
        out_specs=pl.BlockSpec((tile_b, A), lambda i: (i, 0)),  # narrow, un-padded output
        compiler_params=pltpu.CompilerParams(
            dimension_semantics=("parallel",),  # batch tiles split across v7x's 2 TCs
        ),
        cost_estimate=pl.CostEstimate(
            flops=flops, transcendentals=0, bytes_accessed=bytes_accessed),
    )(state, w1p, b1p, w2p, b2p, w3p, b3p)

    return out[:B] if bp != B else out


def init_params(key, state_size, action_size, hidden=HIDDEN):
    """Deterministic init mimicking nn.Linear default (uniform +/- 1/sqrt(fan_in))."""
    keys = jax.random.split(key, 6)

    def linear(kw, kb, fan_in, fan_out):
        bound = 1.0 / jnp.sqrt(fan_in)
        w = jax.random.uniform(kw, (fan_in, fan_out), jnp.float32, -bound, bound)
        b = jax.random.uniform(kb, (1, fan_out), jnp.float32, -bound, bound)
        return w, b

    w1, b1 = linear(keys[0], keys[1], state_size, hidden)
    w2, b2 = linear(keys[2], keys[3], hidden, hidden)
    w3, b3 = linear(keys[4], keys[5], hidden, action_size)
    return {"w1": w1, "b1": b1, "w2": w2, "b2": b2, "w3": w3, "b3": b3}


if __name__ == "__main__":
    state_size, action_size = 4, 2   # CartPole-v1: 4-dim state, 2 actions
    replay_batch = 1024              # replay-buffer sized forward -> Pallas path

    key = jax.random.PRNGKey(0)
    kx, kp = jax.random.split(key)
    params = init_params(kp, state_size, action_size)
    state = jax.random.normal(kx, (replay_batch, state_size), dtype=jnp.float32)

    # Pallas path (grid=(2,) batch tiles of 512, narrow f32 output, bf16 MXU matmuls)
    q_values = qnetwork_forward(state, params)
    jax.block_until_ready(q_values)
    assert q_values.shape == (replay_batch, action_size)
    expected = _mlp_bf16(state, params)
    assert jnp.allclose(q_values, expected, atol=1e-2, rtol=1e-2), "mismatch vs bf16 reference"

    # Tiny action-selection batch goes through the fused-XLA fallback path
    # (same bf16-matmul / f32-accumulate numerics as the kernel).
    small_state = jax.random.normal(kx, (8, state_size), dtype=jnp.float32)
    q_small = qnetwork_forward(small_state, params)
    jax.block_until_ready(q_small)
    assert q_small.shape == (8, action_size)
    assert jnp.allclose(q_small, _mlp_bf16(small_state, params), atol=1e-5)

    print("KERNEL_OK")
</pallas_src>

<mosaic_0001>
module attributes {stable_mosaic.version = 11 : i64} {
  func.func @qnet_kernel(%arg0: i32, %arg1: memref<512x4xf32, #tpu.memory_space<vmem>>, %arg2: memref<4x128xbf16, #tpu.memory_space<vmem>>, %arg3: memref<1x128xf32, #tpu.memory_space<vmem>>, %arg4: memref<128x128xbf16, #tpu.memory_space<vmem>>, %arg5: memref<1x128xf32, #tpu.memory_space<vmem>>, %arg6: memref<128x128xbf16, #tpu.memory_space<vmem>>, %arg7: memref<1x128xf32, #tpu.memory_space<vmem>>, %arg8: memref<512x2xf32, #tpu.memory_space<vmem>>) attributes {dimension_semantics = [#tpu.dimension_semantics<parallel>], iteration_bounds = array<i64: 2>, scalar_prefetch = 0 : i64, scratch_operands = 0 : i64, tpu.core_type = #tpu.core_type<tc>, window_params = [{transform_indices = @transform_0, window_bounds = array<i64: 512, 4>}, {pipeline_mode = #tpu.pipeline_mode<synchronous>, transform_indices = @transform_1, window_bounds = array<i64: 4, 128>}, {pipeline_mode = #tpu.pipeline_mode<synchronous>, transform_indices = @transform_2, window_bounds = array<i64: 1, 128>}, {pipeline_mode = #tpu.pipeline_mode<synchronous>, transform_indices = @transform_3, window_bounds = array<i64: 128, 128>}, {pipeline_mode = #tpu.pipeline_mode<synchronous>, transform_indices = @transform_4, window_bounds = array<i64: 1, 128>}, {pipeline_mode = #tpu.pipeline_mode<synchronous>, transform_indices = @transform_5, window_bounds = array<i64: 128, 128>}, {pipeline_mode = #tpu.pipeline_mode<synchronous>, transform_indices = @transform_6, window_bounds = array<i64: 1, 128>}, {transform_indices = @transform_7, window_bounds = array<i64: 512, 2>}]} {
    %c0 = arith.constant 0 : index
    %c0_0 = arith.constant 0 : index
    %0 = vector.load %arg1[%c0, %c0_0] : memref<512x4xf32, #tpu.memory_space<vmem>>, vector<512x4xf32>
    %1 = arith.truncf %0 : vector<512x4xf32> to vector<512x4xbf16>
    %c0_1 = arith.constant 0 : index
    %c0_2 = arith.constant 0 : index
    %2 = vector.load %arg2[%c0_1, %c0_2] : memref<4x128xbf16, #tpu.memory_space<vmem>>, vector<4x128xbf16>
    %cst = arith.constant dense<0.000000e+00> : vector<512x128xf32>
    %3 = tpu.matmul %1, %2, %cst {dimension_numbers = #tpu.dot_dimension_numbers<[1], [0], [0], [1], [0, 0, 1, 1], [], []>} : vector<512x4xbf16>, vector<4x128xbf16>, vector<512x128xf32> -> vector<512x128xf32>
    %c0_3 = arith.constant 0 : index
    %c0_4 = arith.constant 0 : index
    %4 = vector.load %arg3[%c0_3, %c0_4] : memref<1x128xf32, #tpu.memory_space<vmem>>, vector<1x128xf32>
    %5 = vector.broadcast %4 : vector<1x128xf32> to vector<512x128xf32>
    %6 = arith.addf %3, %5 : vector<512x128xf32>
    %cst_5 = arith.constant 0.000000e+00 : f32
    %7 = vector.broadcast %cst_5 : f32 to vector<512x128xf32>
    %8 = arith.maximumf %6, %7 : vector<512x128xf32>
    %9 = arith.truncf %8 : vector<512x128xf32> to vector<512x128xbf16>
    %c0_6 = arith.constant 0 : index
    %c0_7 = arith.constant 0 : index
    %10 = vector.load %arg4[%c0_6, %c0_7] : memref<128x128xbf16, #tpu.memory_space<vmem>>, vector<128x128xbf16>
    %cst_8 = arith.constant dense<0.000000e+00> : vector<512x128xf32>
    %11 = tpu.matmul %9, %10, %cst_8 {dimension_numbers = #tpu.dot_dimension_numbers<[1], [0], [0], [1], [0, 0, 1, 1], [], []>} : vector<512x128xbf16>, vector<128x128xbf16>, vector<512x128xf32> -> vector<512x128xf32>
    %c0_9 = arith.constant 0 : index
    %c0_10 = arith.constant 0 : index
    %12 = vector.load %arg5[%c0_9, %c0_10] : memref<1x128xf32, #tpu.memory_space<vmem>>, vector<1x128xf32>
    %13 = vector.broadcast %12 : vector<1x128xf32> to vector<512x128xf32>
    %14 = arith.addf %11, %13 : vector<512x128xf32>
    %cst_11 = arith.constant 0.000000e+00 : f32
    %15 = vector.broadcast %cst_11 : f32 to vector<512x128xf32>
    %16 = arith.maximumf %14, %15 : vector<512x128xf32>
    %17 = arith.truncf %16 : vector<512x128xf32> to vector<512x128xbf16>
    %c0_12 = arith.constant 0 : index
    %c0_13 = arith.constant 0 : index
    %18 = vector.load %arg6[%c0_12, %c0_13] : memref<128x128xbf16, #tpu.memory_space<vmem>>, vector<128x128xbf16>
    %cst_14 = arith.constant dense<0.000000e+00> : vector<512x128xf32>
    %19 = tpu.matmul %17, %18, %cst_14 {dimension_numbers = #tpu.dot_dimension_numbers<[1], [0], [0], [1], [0, 0, 1, 1], [], []>} : vector<512x128xbf16>, vector<128x128xbf16>, vector<512x128xf32> -> vector<512x128xf32>
    %c0_15 = arith.constant 0 : index
    %c0_16 = arith.constant 0 : index
    %20 = vector.load %arg7[%c0_15, %c0_16] : memref<1x128xf32, #tpu.memory_space<vmem>>, vector<1x128xf32>
    %21 = vector.broadcast %20 : vector<1x128xf32> to vector<512x128xf32>
    %22 = arith.addf %19, %21 : vector<512x128xf32>
    %23 = vector.extract_strided_slice %22 {offsets = [0, 0], sizes = [512, 2], strides = [1, 1]} : vector<512x128xf32> to vector<512x2xf32>
    %c0_17 = arith.constant 0 : index
    %c0_18 = arith.constant 0 : index
    %24 = vector.load %arg8[%c0_17, %c0_18] : memref<512x2xf32, #tpu.memory_space<vmem>>, vector<512x2xf32>
    tpu.vector_store %arg8[%c0_17, %c0_18], %23 {strides = array<i32>} : memref<512x2xf32, #tpu.memory_space<vmem>>, vector<512x2xf32>,
    return
  }
  func.func @transform_0(%arg0: i32) -> (i32, i32) {
    %c0_i32 = arith.constant 0 : i32
    %c0_i32_0 = arith.constant 0 : i32
    return %arg0, %c0_i32 : i32, i32
  }
  func.func @transform_1(%arg0: i32) -> (i32, i32) {
    %c0_i32 = arith.constant 0 : i32
    %c0_i32_0 = arith.constant 0 : i32
    %c0_i32_1 = arith.constant 0 : i32
    return %c0_i32, %c0_i32_0 : i32, i32
  }
  func.func @transform_2(%arg0: i32) -> (i32, i32) {
    %c0_i32 = arith.constant 0 : i32
    %c0_i32_0 = arith.constant 0 : i32
    %c0_i32_1 = arith.constant 0 : i32
    return %c0_i32, %c0_i32_0 : i32, i32
  }
  func.func @transform_3(%arg0: i32) -> (i32, i32) {
    %c0_i32 = arith.constant 0 : i32
    %c0_i32_0 = arith.constant 0 : i32
    %c0_i32_1 = arith.constant 0 : i32
    return %c0_i32, %c0_i32_0 : i32, i32
  }
  func.func @transform_4(%arg0: i32) -> (i32, i32) {
    %c0_i32 = arith.constant 0 : i32
    %c0_i32_0 = arith.constant 0 : i32
    %c0_i32_1 = arith.constant 0 : i32
    return %c0_i32, %c0_i32_0 : i32, i32
  }
  func.func @transform_5(%arg0: i32) -> (i32, i32) {
    %c0_i32 = arith.constant 0 : i32
    %c0_i32_0 = arith.constant 0 : i32
    %c0_i32_1 = arith.constant 0 : i32
    return %c0_i32, %c0_i32_0 : i32, i32
  }
  func.func @transform_6(%arg0: i32) -> (i32, i32) {
    %c0_i32 = arith.constant 0 : i32
    %c0_i32_0 = arith.constant 0 : i32
    %c0_i32_1 = arith.constant 0 : i32
    return %c0_i32, %c0_i32_0 : i32, i32
  }
  func.func @transform_7(%arg0: i32) -> (i32, i32) {
    %c0_i32 = arith.constant 0 : i32
    %c0_i32_0 = arith.constant 0 : i32
    return %arg0, %c0_i32 : i32, i32
  }
}

</mosaic_0001>

<llo_original>
// kernel: qnetwork_forward.1
$region0: #{qnetwork_forward.1}
  #allocation0 [shape = 'u32[]', space=smem, size = 0x4, offset = 0x4, fixed_abs, tag = 'smem constant byte address 0x4 - core index']
  #allocation1 [shape = 'u32[144,128]{1,0:T(1,128)}', space=vmem, size = 0x12000, scoped, tag = 'internal scratch']
  %s0 = inlined_call_operand.vmem [shape: f32[1024,4], index: 0, kind: input, shape index: {}]
  %s1 = inlined_call_operand.vmem [shape: bf16[4,128], index: 1, kind: input, shape index: {}]
  %s2 = inlined_call_operand.vmem [shape: f32[1,128], index: 2, kind: input, shape index: {}]
  %s3 = inlined_call_operand.vmem [shape: bf16[128,128], index: 3, kind: input, shape index: {}]
  %s4 = inlined_call_operand.vmem [shape: f32[1,128], index: 4, kind: input, shape index: {}]
  %s5 = inlined_call_operand.vmem [shape: bf16[128,128], index: 5, kind: input, shape index: {}]
  %s6 = inlined_call_operand.vmem [shape: f32[1,128], index: 6, kind: input, shape index: {}]
  %s7 = inlined_call_operand.vmem [shape: f32[1024,2], index: 7, kind: output, shape index: {}]
  %s8 = sld [smem:[#allocation0]]
  $region61: #{qnetwork_forward.1} parent=0
    _
  %s10 = ssub.s32 1, %s8
  %s11 = scalar_select 0, %s10, %s8
  loop: start=0, step=1, limit=4
  $region2: #{qnetwork_forward.1} parent=0 // loop_pre_header
    _
  $region3: #{qnetwork_forward.1} parent=0 // loop_header
    %s13 = sphi 0, %s17
    %p14 = scmp.ge.s32.totalorder %s13, 4
    %s23 = sphi 0, %s25
    %s26 = sphi 0, %s23
    %s27 = sphi 0, %s26
    %s43 = sphi 0, %s27
    %s47 = sphi 0, %s47
    %s49 = sphi 0, %s47
    %s50 = sphi 0, %s49
    %s64 = sphi 0, %s50
    %s68 = sphi 0, %s68
    %s70 = sphi 0, %s68
    %s71 = sphi 0, %s70
    %s85 = sphi 0, %s71
    %s89 = sphi 0, %s89
    %s91 = sphi 0, %s89
    %s92 = sphi 0, %s91
    %s106 = sphi 0, %s92
    %s110 = sphi 0, %s110
    %s112 = sphi 0, %s110
    %s113 = sphi 0, %s112
    %s127 = sphi 0, %s113
    %s131 = sphi 0, %s131
    %s133 = sphi 0, %s131
    %s134 = sphi 0, %s133
    %s148 = sphi 0, %s134
    %s152 = sphi 0, %s152
    %s154 = sphi 0, %s152
    %s155 = sphi 0, %s154
    %s169 = sphi 0, %s155
    %s175 = sphi 0, %s177
    %s178 = sphi 0, %s175
    %s179 = sphi 0, %s178
    %s195 = sphi 0, %s179
  $region4: #{qnetwork_forward.1} parent=0 // loop_header_branch
    %16 = sbr.rel (%p14) target = $region8
  $region5: #{qnetwork_forward.1} parent=0 // loop_body
    %s18 = ssub.s32 %s13, 1
    %s19 = ssub.s32 %s13, 2
    %s20 = sadd.s32 %s13, 1
    %s21 = ssub.s32 %s13, %s20
    %p22 = scmp.eq.s32.totalorder %s21, 0
    %s24 = sadd.s32 %s23, 1
    %s25 = scalar_select %p22, %s23, %s24
    %p28 = pneg %p22
    %p29 = scmp.eq.s32.totalorder %s13, 1
    %p30 = por %p28, %p29
    %p31 = scmp.ne.s32.totalorder %s23, %s26
    %p32 = scmp.eq.s32.totalorder %s13, 0
    %p33 = por %p31, %p32
    %p34 = scmp.ne.s32.totalorder %s23, %s26
    %p35 = scmp.eq.s32.totalorder %s18, 1
    %p36 = por %p34, %p35
    %p37 = scmp.ne.s32.totalorder %s26, %s27
    %p38 = scmp.eq.s32.totalorder %s18, 0
    %p39 = por %p37, %p38
    %p40 = scmp.ne.s32.totalorder %s26, %s27
    %p41 = scmp.eq.s32.totalorder %s19, 1
    %p42 = por %p40, %p41
    %p44 = scmp.ne.s32.totalorder %s27, %s43
    %p45 = scmp.eq.s32.totalorder %s19, 0
    %p46 = por %p44, %p45
    %s48 = sadd.s32 %s47, 1
    %p51 = scmp.eq.s32.totalorder %s13, 1
    %p52 = scmp.ne.s32.totalorder %s47, %s49
    %p53 = scmp.eq.s32.totalorder %s13, 0
    %p54 = por %p52, %p53
    %p55 = scmp.ne.s32.totalorder %s47, %s49
    %p56 = scmp.eq.s32.totalorder %s18, 1
    %p57 = por %p55, %p56
    %p58 = scmp.ne.s32.totalorder %s49, %s50
    %p59 = scmp.eq.s32.totalorder %s18, 0
    %p60 = por %p58, %p59
    %p61 = scmp.ne.s32.totalorder %s49, %s50
    %p62 = scmp.eq.s32.totalorder %s19, 1
    %p63 = por %p61, %p62
    %p65 = scmp.ne.s32.totalorder %s50, %s64
    %p66 = scmp.eq.s32.totalorder %s19, 0
    %p67 = por %p65, %p66
    %s69 = sadd.s32 %s68, 1
    %p72 = scmp.eq.s32.totalorder %s13, 1
    %p73 = scmp.ne.s32.totalorder %s68, %s70
    %p74 = scmp.eq.s32.totalorder %s13, 0
    %p75 = por %p73, %p74
    %p76 = scmp.ne.s32.totalorder %s68, %s70
    %p77 = scmp.eq.s32.totalorder %s18, 1
    %p78 = por %p76, %p77
    %p79 = scmp.ne.s32.totalorder %s70, %s71
    %p80 = scmp.eq.s32.totalorder %s18, 0
    %p81 = por %p79, %p80
    %p82 = scmp.ne.s32.totalorder %s70, %s71
    %p83 = scmp.eq.s32.totalorder %s19, 1
    %p84 = por %p82, %p83
    %p86 = scmp.ne.s32.totalorder %s71, %s85
    %p87 = scmp.eq.s32.totalorder %s19, 0
    %p88 = por %p86, %p87
    %s90 = sadd.s32 %s89, 1
    %p93 = scmp.eq.s32.totalorder %s13, 1
    %p94 = scmp.ne.s32.totalorder %s89, %s91
    %p95 = scmp.eq.s32.totalorder %s13, 0
    %p96 = por %p94, %p95
    %p97 = scmp.ne.s32.totalorder %s89, %s91
    %p98 = scmp.eq.s32.totalorder %s18, 1
    %p99 = por %p97, %p98
    %p100 = scmp.ne.s32.totalorder %s91, %s92
    %p101 = scmp.eq.s32.totalorder %s18, 0
    %p102 = por %p100, %p101
    %p103 = scmp.ne.s32.totalorder %s91, %s92
    %p104 = scmp.eq.s32.totalorder %s19, 1
    %p105 = por %p103, %p104
    %p107 = scmp.ne.s32.totalorder %s92, %s106
    %p108 = scmp.eq.s32.totalorder %s19, 0
    %p109 = por %p107, %p108
    %s111 = sadd.s32 %s110, 1
    %p114 = scmp.eq.s32.totalorder %s13, 1
    %p115 = scmp.ne.s32.totalorder %s110, %s112
    %p116 = scmp.eq.s32.totalorder %s13, 0
    %p117 = por %p115, %p116
    %p118 = scmp.ne.s32.totalorder %s110, %s112
    %p119 = scmp.eq.s32.totalorder %s18, 1
    %p120 = por %p118, %p119
    %p121 = scmp.ne.s32.totalorder %s112, %s113
    %p122 = scmp.eq.s32.totalorder %s18, 0
    %p123 = por %p121, %p122
    %p124 = scmp.ne.s32.totalorder %s112, %s113
    %p125 = scmp.eq.s32.totalorder %s19, 1
    %p126 = por %p124, %p125
    %p128 = scmp.ne.s32.totalorder %s113, %s127
    %p129 = scmp.eq.s32.totalorder %s19, 0
    %p130 = por %p128, %p129
    %s132 = sadd.s32 %s131, 1
    %p135 = scmp.eq.s32.totalorder %s13, 1
    %p136 = scmp.ne.s32.totalorder %s131, %s133
    %p137 = scmp.eq.s32.totalorder %s13, 0
    %p138 = por %p136, %p137
    %p139 = scmp.ne.s32.totalorder %s131, %s133
    %p140 = scmp.eq.s32.totalorder %s18, 1
    %p141 = por %p139, %p140
    %p142 = scmp.ne.s32.totalorder %s133, %s134
    %p143 = scmp.eq.s32.totalorder %s18, 0
    %p144 = por %p142, %p143
    %p145 = scmp.ne.s32.totalorder %s133, %s134
    %p146 = scmp.eq.s32.totalorder %s19, 1
    %p147 = por %p145, %p146
    %p149 = scmp.ne.s32.totalorder %s134, %s148
    %p150 = scmp.eq.s32.totalorder %s19, 0
    %p151 = por %p149, %p150
    %s153 = sadd.s32 %s152, 1
    %p156 = scmp.eq.s32.totalorder %s13, 1
    %p157 = scmp.ne.s32.totalorder %s152, %s154
    %p158 = scmp.eq.s32.totalorder %s13, 0
    %p159 = por %p157, %p158
    %p160 = scmp.ne.s32.totalorder %s152, %s154
    %p161 = scmp.eq.s32.totalorder %s18, 1
    %p162 = por %p160, %p161
    %p163 = scmp.ne.s32.totalorder %s154, %s155
    %p164 = scmp.eq.s32.totalorder %s18, 0
    %p165 = por %p163, %p164
    %p166 = scmp.ne.s32.totalorder %s154, %s155
    %p167 = scmp.eq.s32.totalorder %s19, 1
    %p168 = por %p166, %p167
    %p170 = scmp.ne.s32.totalorder %s155, %s169
    %p171 = scmp.eq.s32.totalorder %s19, 0
    %p172 = por %p170, %p171
    %s173 = ssub.s32 %s13, %s20
    %p174 = scmp.eq.s32.totalorder %s173, 0
    %s176 = sadd.s32 %s175, 1
    %s177 = scalar_select %p174, %s175, %s176
    %p180 = pneg %p174
    %p181 = scmp.eq.s32.totalorder %s13, 1
    %p182 = por %p180, %p181
    %p183 = scmp.ne.s32.totalorder %s175, %s178
    %p184 = scmp.eq.s32.totalorder %s13, 0
    %p185 = por %p183, %p184
    %p186 = scmp.ne.s32.totalorder %s175, %s178
    %p187 = scmp.eq.s32.totalorder %s18, 1
    %p188 = por %p186, %p187
    %p189 = scmp.ne.s32.totalorder %s178, %s179
    %p190 = scmp.eq.s32.totalorder %s18, 0
    %p191 = por %p189, %p190
    %p192 = scmp.ne.s32.totalorder %s178, %s179
    %p193 = scmp.eq.s32.totalorder %s19, 1
    %p194 = por %p192, %p193
    %p196 = scmp.ne.s32.totalorder %s179, %s195
    %p197 = scmp.eq.s32.totalorder %s19, 0
    %p198 = por %p196, %p197
    %p199 = scmp.le.s32.totalorder 1, %s13
    %p200 = scmp.lt.s32.totalorder %s13, 3
    %p201 = pnand %p199, %p200
    %p202 = pneg %p201
    // Predicated region
    $region9: #{qnetwork_forward.1} parent=5 // pred_check
      _
    $region10: #{qnetwork_forward.1} parent=5 // pred_check_branch
      %204 = sbr.rel (%p201) target = $region12
    $region11: #{qnetwork_forward.1} parent=5 // pred_region
      %s205 = ssub.s32 %s13, 1
      // Predicated region
      $region13: #{qnetwork_forward.1} parent=11 // pred_check
        %p206 = pneg %p60
      $region14: #{qnetwork_forward.1} parent=11 // pred_check_branch
        %208 = sbr.rel (%p206) target = $region16
      $region15: #{qnetwork_forward.1} parent=11 // pred_region
        _
      $region16: #{qnetwork_forward.1} parent=11 // pred_fallthru
        _
      // Predicated region
      $region17: #{qnetwork_forward.1} parent=11 // pred_check
        %p209 = pneg %p81
      $region18: #{qnetwork_forward.1} parent=11 // pred_check_branch
        %211 = sbr.rel (%p209) target = $region20
      $region19: #{qnetwork_forward.1} parent=11 // pred_region
        _
      $region20: #{qnetwork_forward.1} parent=11 // pred_fallthru
        _
      // Predicated region
      $region21: #{qnetwork_forward.1} parent=11 // pred_check
        %p212 = pneg %p102
      $region22: #{qnetwork_forward.1} parent=11 // pred_check_branch
        %214 = sbr.rel (%p212) target = $region24
      $region23: #{qnetwork_forward.1} parent=11 // pred_region
        _
      $region24: #{qnetwork_forward.1} parent=11 // pred_fallthru
        _
      // Predicated region
      $region25: #{qnetwork_forward.1} parent=11 // pred_check
        %p215 = pneg %p123
      $region26: #{qnetwork_forward.1} parent=11 // pred_check_branch
        %217 = sbr.rel (%p215) target = $region28
      $region27: #{qnetwork_forward.1} parent=11 // pred_region
        _
      $region28: #{qnetwork_forward.1} parent=11 // pred_fallthru
        _
      // Predicated region
      $region29: #{qnetwork_forward.1} parent=11 // pred_check
        %p218 = pneg %p144
      $region30: #{qnetwork_forward.1} parent=11 // pred_check_branch
        %220 = sbr.rel (%p218) target = $region32
      $region31: #{qnetwork_forward.1} parent=11 // pred_region
        _
      $region32: #{qnetwork_forward.1} parent=11 // pred_fallthru
        _
      // Predicated region
      $region33: #{qnetwork_forward.1} parent=11 // pred_check
        %p221 = pneg %p165
      $region34: #{qnetwork_forward.1} parent=11 // pred_check_branch
        %223 = sbr.rel (%p221) target = $region36
      $region35: #{qnetwork_forward.1} parent=11 // pred_region
        _
      $region36: #{qnetwork_forward.1} parent=11 // pred_fallthru
        _
    $region12: #{qnetwork_forward.1} parent=5 // pred_fallthru
      _
    %p224 = scmp.lt.s32.totalorder %s13, 2
    // Predicated region
    $region37: #{qnetwork_forward.1} parent=5 // pred_check
      %p225 = pneg %p224
    $region38: #{qnetwork_forward.1} parent=5 // pred_check_branch
      %227 = sbr.rel (%p225) target = $region40
    $region39: #{qnetwork_forward.1} parent=5 // pred_region
      // Predicated region
      $region41: #{qnetwork_forward.1} parent=39 // pred_check
        %p228 = pneg %p33
      $region42: #{qnetwork_forward.1} parent=39 // pred_check_branch
        %230 = sbr.rel (%p228) target = $region44
      $region43: #{qnetwork_forward.1} parent=39 // pred_region
        %s231 = smul.u32 64, %s13
        %p232 = scmp.lt.s32.totalorder %s231, 127
        %s233 = scalar_select %p232, %s231, 127
        %s234 = smul.addr %s233, 8
        %s235 = scalar_lea.vmem %s0, %s234
        %s236 = smul.u32 64, %s13
      $region44: #{qnetwork_forward.1} parent=39 // pred_fallthru
        _
    $region40: #{qnetwork_forward.1} parent=5 // pred_fallthru
      _
    %p237 = scmp.le.s32.totalorder 1, %s13
    %p238 = scmp.lt.s32.totalorder %s13, 3
    %p239 = pnand %p237, %p238
    %p240 = pneg %p239
    // Predicated region
    $region45: #{qnetwork_forward.1} parent=5 // pred_check
      _
    $region46: #{qnetwork_forward.1} parent=5 // pred_check_branch
      %242 = sbr.rel (%p239) target = $region48
    $region47: #{qnetwork_forward.1} parent=5 // pred_region
      %s243 = ssub.s32 %s13, 1
      %s244 = smul.u32 64, %s18
      %p245 = scmp.lt.s32.totalorder %s244, 127
      %s246 = scalar_select %p245, %s244, 127
      %s247 = smul.addr %s246, 8
      %s248 = scalar_lea.vmem %s0, %s247
      %p249 = pneg %p39
      %p250 = pneg %p36
      %p251 = pneg %p60
      %p252 = pneg %p57
      %p253 = pneg %p81
      %p254 = pneg %p78
      %p255 = pneg %p102
      %p256 = pneg %p99
      %p257 = pneg %p123
      %p258 = pneg %p120
      %p259 = pneg %p144
      %p260 = pneg %p141
      %p261 = pneg %p165
      %p262 = pneg %p162
      %p263 = pneg %p191
      %p264 = pneg %p188
      %s265 = smul.u32 64, %s18
      %p266 = scmp.lt.s32.totalorder %s265, 127
      %s267 = scalar_select %p266, %s265, 127
      %s268 = smul.addr %s267, 8
      %s269 = scalar_lea.vmem %s7, %s268
      %s270 = smul.u32 64, %s18
      %p271 = scmp.lt.s32.totalorder %s270, 127
      %s272 = scalar_select %p271, %s270, 127
      %s273 = smul.addr %s272, 8
      %s274 = scalar_lea.vmem %s0, %s273
      %s275 = smul.u32 64, %s18
      %s276 = smul.u32 64, %s18
      %p277 = scmp.lt.s32.totalorder %s276, 127
      %s278 = scalar_select %p277, %s276, 127
      %s279 = smul.addr %s278, 8
      %s280 = scalar_lea.vmem %s7, %s279
      %s281 = smul.u32 64, %s18
      %v283 = vld [vmem:[%s274] sm:$0xff]
      %v284 = vld [vmem:[%s274 + $0x8] sm:$0xff]
      %v285 = vld [vmem:[%s274 + $0x10] sm:$0xff]
      %v286 = vld [vmem:[%s274 + $0x18] sm:$0xff]
      %v287 = vld [vmem:[%s274 + $0x20] sm:$0xff]
      %v288 = vld [vmem:[%s274 + $0x28] sm:$0xff]
      %v289 = vld [vmem:[%s274 + $0x30] sm:$0xff]
      %v290 = vld [vmem:[%s274 + $0x38] sm:$0xff]
      %v291 = vld [vmem:[%s274 + $0x40] sm:$0xff]
      %v292 = vld [vmem:[%s274 + $0x48] sm:$0xff]
      %v293 = vld [vmem:[%s274 + $0x50] sm:$0xff]
      %v294 = vld [vmem:[%s274 + $0x58] sm:$0xff]
      %v295 = vld [vmem:[%s274 + $0x60] sm:$0xff]
      %v296 = vld [vmem:[%s274 + $0x68] sm:$0xff]
      %v297 = vld [vmem:[%s274 + $0x70] sm:$0xff]
      %v298 = vld [vmem:[%s274 + $0x78] sm:$0xff]
      %v299 = vld [vmem:[%s274 + $0x80] sm:$0xff]
      %v300 = vld [vmem:[%s274 + $0x88] sm:$0xff]
      %v301 = vld [vmem:[%s274 + $0x90] sm:$0xff]
      %v302 = vld [vmem:[%s274 + $0x98] sm:$0xff]
      %v303 = vld [vmem:[%s274 + $0xa0] sm:$0xff]
      %v304 = vld [vmem:[%s274 + $0xa8] sm:$0xff]
      %v305 = vld [vmem:[%s274 + $0xb0] sm:$0xff]
      %v306 = vld [vmem:[%s274 + $0xb8] sm:$0xff]
      %v307 = vld [vmem:[%s274 + $0xc0] sm:$0xff]
      %v308 = vld [vmem:[%s274 + $0xc8] sm:$0xff]
      %v309 = vld [vmem:[%s274 + $0xd0] sm:$0xff]
      %v310 = vld [vmem:[%s274 + $0xd8] sm:$0xff]
      %v311 = vld [vmem:[%s274 + $0xe0] sm:$0xff]
      %v312 = vld [vmem:[%s274 + $0xe8] sm:$0xff]
      %v313 = vld [vmem:[%s274 + $0xf0] sm:$0xff]
      %v314 = vld [vmem:[%s274 + $0xf8] sm:$0xff]
      %v315 = vld [vmem:[%s274 + $0x100] sm:$0xff]
      %v316 = vld [vmem:[%s274 + $0x108] sm:$0xff]
      %v317 = vld [vmem:[%s274 + $0x110] sm:$0xff]
      %v318 = vld [vmem:[%s274 + $0x118] sm:$0xff]
      %v319 = vld [vmem:[%s274 + $0x120] sm:$0xff]
      %v320 = vld [vmem:[%s274 + $0x128] sm:$0xff]
      %v321 = vld [vmem:[%s274 + $0x130] sm:$0xff]
      %v322 = vld [vmem:[%s274 + $0x138] sm:$0xff]
      %v323 = vld [vmem:[%s274 + $0x140] sm:$0xff]
      %v324 = vld [vmem:[%s274 + $0x148] sm:$0xff]
      %v325 = vld [vmem:[%s274 + $0x150] sm:$0xff]
      %v326 = vld [vmem:[%s274 + $0x158] sm:$0xff]
      %v327 = vld [vmem:[%s274 + $0x160] sm:$0xff]
      %v328 = vld [vmem:[%s274 + $0x168] sm:$0xff]
      %v329 = vld [vmem:[%s274 + $0x170] sm:$0xff]
      %v330 = vld [vmem:[%s274 + $0x178] sm:$0xff]
      %v331 = vld [vmem:[%s274 + $0x180] sm:$0xff]
      %v332 = vld [vmem:[%s274 + $0x188] sm:$0xff]
      %v333 = vld [vmem:[%s274 + $0x190] sm:$0xff]
      %v334 = vld [vmem:[%s274 + $0x198] sm:$0xff]
      %v335 = vld [vmem:[%s274 + $0x1a0] sm:$0xff]
      %v336 = vld [vmem:[%s274 + $0x1a8] sm:$0xff]
      %v337 = vld [vmem:[%s274 + $0x1b0] sm:$0xff]
      %v338 = vld [vmem:[%s274 + $0x1b8] sm:$0xff]
      %v339 = vld [vmem:[%s274 + $0x1c0] sm:$0xff]
      %v340 = vld [vmem:[%s274 + $0x1c8] sm:$0xff]
      %v341 = vld [vmem:[%s274 + $0x1d0] sm:$0xff]
      %v342 = vld [vmem:[%s274 + $0x1d8] sm:$0xff]
      %v343 = vld [vmem:[%s274 + $0x1e0] sm:$0xff]
      %v344 = vld [vmem:[%s274 + $0x1e8] sm:$0xff]
      %v345 = vld [vmem:[%s274 + $0x1f0] sm:$0xff]
      %v346 = vld [vmem:[%s274 + $0x1f8] sm:$0xff]
      %v347 = vpack.c.bf16 %v284, %v283
      %v348 = vpack.c.bf16 %v286, %v285
      %v349 = vpack.c.bf16 %v288, %v287
      %v350 = vpack.c.bf16 %v290, %v289
      %v351 = vpack.c.bf16 %v292, %v291
      %v352 = vpack.c.bf16 %v294, %v293
      %v353 = vpack.c.bf16 %v296, %v295
      %v354 = vpack.c.bf16 %v298, %v297
      %v355 = vpack.c.bf16 %v300, %v299
      %v356 = vpack.c.bf16 %v302, %v301
      %v357 = vpack.c.bf16 %v304, %v303
      %v358 = vpack.c.bf16 %v306, %v305
      %v359 = vpack.c.bf16 %v308, %v307
      %v360 = vpack.c.bf16 %v310, %v309
      %v361 = vpack.c.bf16 %v312, %v311
      %v362 = vpack.c.bf16 %v314, %v313
      %v363 = vpack.c.bf16 %v316, %v315
      %v364 = vpack.c.bf16 %v318, %v317
      %v365 = vpack.c.bf16 %v320, %v319
      %v366 = vpack.c.bf16 %v322, %v321
      %v367 = vpack.c.bf16 %v324, %v323
      %v368 = vpack.c.bf16 %v326, %v325
      %v369 = vpack.c.bf16 %v328, %v327
      %v370 = vpack.c.bf16 %v330, %v329
      %v371 = vpack.c.bf16 %v332, %v331
      %v372 = vpack.c.bf16 %v334, %v333
      %v373 = vpack.c.bf16 %v336, %v335
      %v374 = vpack.c.bf16 %v338, %v337
      %v375 = vpack.c.bf16 %v340, %v339
      %v376 = vpack.c.bf16 %v342, %v341
      %v377 = vpack.c.bf16 %v344, %v343
      %v378 = vpack.c.bf16 %v346, %v345
      %v379 = vld [vmem:[%s1] sm:$0x3]
      %v380 = vld [vmem:[%s2] sm:$0x1]
      %v382 = vlaneseq
      %v383 = vshrl.u32 %v382, 7
      %v384 = vsub.s32 0, %v383
      %v385 = vrot.slane %v380, %v384
      %vm387 = vcmask 31744
      %v389 = vsel %vm387, %v347, 0
      %v392 = vsel %vm387, %v348, 0
      %v395 = vsel %vm387, %v349, 0
      %v398 = vsel %vm387, %v350, 0
      %v401 = vsel %vm387, %v351, 0
      %v404 = vsel %vm387, %v352, 0
      %v407 = vsel %vm387, %v353, 0
      %v410 = vsel %vm387, %v354, 0
      %v413 = vsel %vm387, %v355, 0
      %v416 = vsel %vm387, %v356, 0
      %v419 = vsel %vm387, %v357, 0
      %v422 = vsel %vm387, %v358, 0
      %v425 = vsel %vm387, %v359, 0
      %v428 = vsel %vm387, %v360, 0
      %v431 = vsel %vm387, %v361, 0
      %v434 = vsel %vm387, %v362, 0
      %v437 = vsel %vm387, %v363, 0
      %v440 = vsel %vm387, %v364, 0
      %v443 = vsel %vm387, %v365, 0
      %v446 = vsel %vm387, %v366, 0
      %v449 = vsel %vm387, %v367, 0
      %v452 = vsel %vm387, %v368, 0
      %v455 = vsel %vm387, %v369, 0
      %v458 = vsel %vm387, %v370, 0
      %v461 = vsel %vm387, %v371, 0
      %v464 = vsel %vm387, %v372, 0
      %v467 = vsel %vm387, %v373, 0
      %v470 = vsel %vm387, %v374, 0
      %v473 = vsel %vm387, %v375, 0
      %v476 = vsel %vm387, %v376, 0
      %v479 = vsel %vm387, %v377, 0
      %v482 = vsel %vm387, %v378, 0
      %vm484 = vcmask 1041408
      %v486 = vsel %vm484, %v379, 0
      %488 = vmatprep.subr.bf16.mxu0 0
      %489 = vmatpush1.bf16.msra.mxu0 %v486
      %490 = vmatprep.subr.bf16.mxu0 0
      %491 = vmatpush1.bf16.msra.mxu0 0
      %492 = vmatprep.subr.bf16.mxu0 0
      %493 = vmatpush1.bf16.msra.mxu0 0
      %494 = vmatprep.subr.bf16.mxu0 0
      %495 = vmatpush1.bf16.msra.mxu0 0
      %496 = vmatprep.subr.bf16.mxu0 0
      %497 = vmatpush1.bf16.msra.mxu0 0
      %498 = vmatprep.subr.bf16.mxu0 0
      %499 = vmatpush1.bf16.msra.mxu0 0
      %500 = vmatprep.subr.bf16.mxu0 0
      %501 = vmatpush1.bf16.msra.mxu0 0
      %502 = vmatprep.subr.bf16.mxu0 0
      %503 = vmatpush1.bf16.msra.mxu0 0
      %504 = vmatprep.subr.bf16.mxu0 0
      %505 = vmatpush1.bf16.msra.mxu0 0
      %506 = vmatprep.subr.bf16.mxu0 0
      %507 = vmatpush1.bf16.msra.mxu0 0
      %508 = vmatprep.subr.bf16.mxu0 0
      %509 = vmatpush1.bf16.msra.mxu0 0
      %510 = vmatprep.subr.bf16.mxu0 0
      %511 = vmatpush1.bf16.msra.mxu0 0
      %512 = vmatprep.subr.bf16.mxu0 0
      %513 = vmatpush1.bf16.msra.mxu0 0
      %514 = vmatprep.subr.bf16.mxu0 0
      %515 = vmatpush1.bf16.msra.mxu0 0
      %516 = vmatprep.subr.bf16.mxu0 0
      %517 = vmatpush1.bf16.msra.mxu0 0
      %518 = vmatprep.subr.bf16.mxu0 0
      %519 = vmatpush1.bf16.msra.mxu0 0
      %520 = vmatprep.mubr.bf16.mxu0 0
      %521 = vmatmul.mubr.bf16.gmra.mrb[0].mxu0 %v389
      %v522 = vpop.f32.mrb[0].mxu0
      %v523 = vadd.f32 %v385, %v522
      %v524 = vpop.f32.mrb[0].mxu0
      %v525 = vpop.f32.mrb[0].mxu0
      %v526 = vadd.f32 %v385, %v525
      %v527 = vpop.f32.mrb[0].mxu0
      %528 = vmatprep.mubr.bf16.mxu0 0
      %529 = vmatmul.mubr.bf16.gmra.mrb[0].mxu0 %v392
      %v530 = vpop.f32.mrb[0].mxu0
      %v531 = vadd.f32 %v385, %v530
      %v532 = vpop.f32.mrb[0].mxu0
      %v533 = vpop.f32.mrb[0].mxu0
      %v534 = vadd.f32 %v385, %v533
      %v535 = vpop.f32.mrb[0].mxu0
      %536 = vmatprep.mubr.bf16.mxu0 0
      %537 = vmatmul.mubr.bf16.gmra.mrb[0].mxu0 %v395
      %v538 = vpop.f32.mrb[0].mxu0
      %v539 = vadd.f32 %v385, %v538
      %v540 = vpop.f32.mrb[0].mxu0
      %v541 = vpop.f32.mrb[0].mxu0
      %v542 = vadd.f32 %v385, %v541
      %v543 = vpop.f32.mrb[0].mxu0
      %544 = vmatprep.mubr.bf16.mxu0 0
      %545 = vmatmul.mubr.bf16.gmra.mrb[0].mxu0 %v398
      %v546 = vpop.f32.mrb[0].mxu0
      %v547 = vadd.f32 %v385, %v546
      %v548 = vpop.f32.mrb[0].mxu0
      %v549 = vpop.f32.mrb[0].mxu0
      %v550 = vadd.f32 %v385, %v549
      %v551 = vpop.f32.mrb[0].mxu0
      %552 = vmatprep.mubr.bf16.mxu0 0
      %553 = vmatmul.mubr.bf16.gmra.mrb[0].mxu0 %v401
      %v554 = vpop.f32.mrb[0].mxu0
      %v555 = vadd.f32 %v385, %v554
      %v556 = vpop.f32.mrb[0].mxu0
      %v557 = vpop.f32.mrb[0].mxu0
      %v558 = vadd.f32 %v385, %v557
      %v559 = vpop.f32.mrb[0].mxu0
      %560 = vmatprep.mubr.bf16.mxu0 0
      %561 = vmatmul.mubr.bf16.gmra.mrb[0].mxu0 %v404
      %v562 = vpop.f32.mrb[0].mxu0
      %v563 = vadd.f32 %v385, %v562
      %v564 = vpop.f32.mrb[0].mxu0
      %v565 = vpop.f32.mrb[0].mxu0
      %v566 = vadd.f32 %v385, %v565
      %v567 = vpop.f32.mrb[0].mxu0
      %568 = vmatprep.mubr.bf16.mxu0 0
      %569 = vmatmul.mubr.bf16.gmra.mrb[0].mxu0 %v407
      %v570 = vpop.f32.mrb[0].mxu0
      %v571 = vadd.f32 %v385, %v570
      %v572 = vpop.f32.mrb[0].mxu0
      %v573 = vpop.f32.mrb[0].mxu0
      %v574 = vadd.f32 %v385, %v573
      %v575 = vpop.f32.mrb[0].mxu0
      %576 = vmatprep.mubr.bf16.mxu0 0
      %577 = vmatmul.mubr.bf16.gmra.mrb[0].mxu0 %v410
      %v578 = vpop.f32.mrb[0].mxu0
      %v579 = vadd.f32 %v385, %v578
      %v580 = vpop.f32.mrb[0].mxu0
      %v581 = vpop.f32.mrb[0].mxu0
      %v582 = vadd.f32 %v385, %v581
      %v583 = vpop.f32.mrb[0].mxu0
      %584 = vmatprep.mubr.bf16.mxu0 0
      %585 = vmatmul.mubr.bf16.gmra.mrb[0].mxu0 %v413
      %v586 = vpop.f32.mrb[0].mxu0
      %v587 = vadd.f32 %v385, %v586
      %v588 = vpop.f32.mrb[0].mxu0
      %v589 = vpop.f32.mrb[0].mxu0
      %v590 = vadd.f32 %v385, %v589
      %v591 = vpop.f32.mrb[0].mxu0
      %592 = vmatprep.mubr.bf16.mxu0 0
      %593 = vmatmul.mubr.bf16.gmra.mrb[0].mxu0 %v416
      %v594 = vpop.f32.mrb[0].mxu0
      %v595 = vadd.f32 %v385, %v594
      %v596 = vpop.f32.mrb[0].mxu0
      %v597 = vpop.f32.mrb[0].mxu0
      %v598 = vadd.f32 %v385, %v597
      %v599 = vpop.f32.mrb[0].mxu0
      %600 = vmatprep.mubr.bf16.mxu0 0
      %601 = vmatmul.mubr.bf16.gmra.mrb[0].mxu0 %v419
      %v602 = vpop.f32.mrb[0].mxu0
      %v603 = vadd.f32 %v385, %v602
      %v604 = vpop.f32.mrb[0].mxu0
      %v605 = vpop.f32.mrb[0].mxu0
      %v606 = vadd.f32 %v385, %v605
      %v607 = vpop.f32.mrb[0].mxu0
      %608 = vmatprep.mubr.bf16.mxu0 0
      %609 = vmatmul.mubr.bf16.gmra.mrb[0].mxu0 %v422
      %v610 = vpop.f32.mrb[0].mxu0
      %v611 = vadd.f32 %v385, %v610
      %v612 = vpop.f32.mrb[0].mxu0
      %v613 = vpop.f32.mrb[0].mxu0
      %v614 = vadd.f32 %v385, %v613
      %v615 = vpop.f32.mrb[0].mxu0
      %616 = vmatprep.mubr.bf16.mxu0 0
      %617 = vmatmul.mubr.bf16.gmra.mrb[0].mxu0 %v425
      %v618 = vpop.f32.mrb[0].mxu0
      %v619 = vadd.f32 %v385, %v618
      %v620 = vpop.f32.mrb[0].mxu0
      %v621 = vpop.f32.mrb[0].mxu0
      %v622 = vadd.f32 %v385, %v621
      %v623 = vpop.f32.mrb[0].mxu0
      %624 = vmatprep.mubr.bf16.mxu0 0
      %625 = vmatmul.mubr.bf16.gmra.mrb[0].mxu0 %v428
      %v626 = vpop.f32.mrb[0].mxu0
      %v627 = vadd.f32 %v385, %v626
      %v628 = vpop.f32.mrb[0].mxu0
      %v629 = vpop.f32.mrb[0].mxu0
      %v630 = vadd.f32 %v385, %v629
      %v631 = vpop.f32.mrb[0].mxu0
      %632 = vmatprep.mubr.bf16.mxu0 0
      %633 = vmatmul.mubr.bf16.gmra.mrb[0].mxu0 %v431
      %v634 = vpop.f32.mrb[0].mxu0
      %v635 = vadd.f32 %v385, %v634
      %v636 = vpop.f32.mrb[0].mxu0
      %v637 = vpop.f32.mrb[0].mxu0
      %v638 = vadd.f32 %v385, %v637
      %v639 = vpop.f32.mrb[0].mxu0
      %640 = vmatprep.mubr.bf16.mxu0 0
      %641 = vmatmul.mubr.bf16.gmra.mrb[0].mxu0 %v434
      %v642 = vpop.f32.mrb[0].mxu0
      %v643 = vadd.f32 %v385, %v642
      %v644 = vpop.f32.mrb[0].mxu0
      %v645 = vpop.f32.mrb[0].mxu0
      %v646 = vadd.f32 %v385, %v645
      %v647 = vpop.f32.mrb[0].mxu0
      %648 = vmatprep.mubr.bf16.mxu0 0
      %649 = vmatmul.mubr.bf16.gmra.mrb[0].mxu0 %v437
      %v650 = vpop.f32.mrb[0].mxu0
      %v651 = vadd.f32 %v385, %v650
      %v652 = vpop.f32.mrb[0].mxu0
      %v653 = vpop.f32.mrb[0].mxu0
      %v654 = vadd.f32 %v385, %v653
      %v655 = vpop.f32.mrb[0].mxu0
      %656 = vmatprep.mubr.bf16.mxu0 0
      %657 = vmatmul.mubr.bf16.gmra.mrb[0].mxu0 %v440
      %v658 = vpop.f32.mrb[0].mxu0
      %v659 = vadd.f32 %v385, %v658
      %v660 = vpop.f32.mrb[0].mxu0
      %v661 = vpop.f32.mrb[0].mxu0
      %v662 = vadd.f32 %v385, %v661
      %v663 = vpop.f32.mrb[0].mxu0
      %664 = vmatprep.mubr.bf16.mxu0 0
      %665 = vmatmul.mubr.bf16.gmra.mrb[0].mxu0 %v443
      %v666 = vpop.f32.mrb[0].mxu0
      %v667 = vadd.f32 %v385, %v666
      %v668 = vpop.f32.mrb[0].mxu0
      %v669 = vpop.f32.mrb[0].mxu0
      %v670 = vadd.f32 %v385, %v669
      %v671 = vpop.f32.mrb[0].mxu0
      %672 = vmatprep.mubr.bf16.mxu0 0
      %673 = vmatmul.mubr.bf16.gmra.mrb[0].mxu0 %v446
      %v674 = vpop.f32.mrb[0].mxu0
      %v675 = vadd.f32 %v385, %v674
      %v676 = vpop.f32.mrb[0].mxu0
      %v677 = vpop.f32.mrb[0].mxu0
      %v678 = vadd.f32 %v385, %v677
      %v679 = vpop.f32.mrb[0].mxu0
      %680 = vmatprep.mubr.bf16.mxu0 0
      %681 = vmatmul.mubr.bf16.gmra.mrb[0].mxu0 %v449
      %v682 = vpop.f32.mrb[0].mxu0
      %v683 = vadd.f32 %v385, %v682
      %v684 = vpop.f32.mrb[0].mxu0
      %v685 = vpop.f32.mrb[0].mxu0
      %v686 = vadd.f32 %v385, %v685
      %v687 = vpop.f32.mrb[0].mxu0
      %688 = vmatprep.mubr.bf16.mxu0 0
      %689 = vmatmul.mubr.bf16.gmra.mrb[0].mxu0 %v452
      %v690 = vpop.f32.mrb[0].mxu0
      %v691 = vadd.f32 %v385, %v690
      %v692 = vpop.f32.mrb[0].mxu0
      %v693 = vpop.f32.mrb[0].mxu0
      %v694 = vadd.f32 %v385, %v693
      %v695 = vpop.f32.mrb[0].mxu0
      %696 = vmatprep.mubr.bf16.mxu0 0
      %697 = vmatmul.mubr.bf16.gmra.mrb[0].mxu0 %v455
      %v698 = vpop.f32.mrb[0].mxu0
      %v699 = vadd.f32 %v385, %v698
      %v700 = vpop.f32.mrb[0].mxu0
      %v701 = vpop.f32.mrb[0].mxu0
      %v702 = vadd.f32 %v385, %v701
      %v703 = vpop.f32.mrb[0].mxu0
      %704 = vmatprep.mubr.bf16.mxu0 0
      %705 = vmatmul.mubr.bf16.gmra.mrb[0].mxu0 %v458
      %v706 = vpop.f32.mrb[0].mxu0
      %v707 = vadd.f32 %v385, %v706
      %v708 = vpop.f32.mrb[0].mxu0
      %v709 = vpop.f32.mrb[0].mxu0
      %v710 = vadd.f32 %v385, %v709
      %v711 = vpop.f32.mrb[0].mxu0
      %712 = vmatprep.mubr.bf16.mxu0 0
      %713 = vmatmul.mubr.bf16.gmra.mrb[0].mxu0 %v461
      %v714 = vpop.f32.mrb[0].mxu0
      %v715 = vadd.f32 %v385, %v714
      %v716 = vpop.f32.mrb[0].mxu0
      %v717 = vpop.f32.mrb[0].mxu0
      %v718 = vadd.f32 %v385, %v717
      %v719 = vpop.f32.mrb[0].mxu0
      %720 = vmatprep.mubr.bf16.mxu0 0
      %721 = vmatmul.mubr.bf16.gmra.mrb[0].mxu0 %v464
      %v722 = vpop.f32.mrb[0].mxu0
      %v723 = vadd.f32 %v385, %v722
      %v724 = vpop.f32.mrb[0].mxu0
      %v725 = vpop.f32.mrb[0].mxu0
      %v726 = vadd.f32 %v385, %v725
      %v727 = vpop.f32.mrb[0].mxu0
      %728 = vmatprep.mubr.bf16.mxu0 0
      %729 = vmatmul.mubr.bf16.gmra.mrb[0].mxu0 %v467
      %v730 = vpop.f32.mrb[0].mxu0
      %v731 = vadd.f32 %v385, %v730
      %v732 = vpop.f32.mrb[0].mxu0
      %v733 = vpop.f32.mrb[0].mxu0
      %v734 = vadd.f32 %v385, %v733
      %v735 = vpop.f32.mrb[0].mxu0
      %736 = vmatprep.mubr.bf16.mxu0 0
      %737 = vmatmul.mubr.bf16.gmra.mrb[0].mxu0 %v470
      %v738 = vpop.f32.mrb[0].mxu0
      %v739 = vadd.f32 %v385, %v738
      %v740 = vpop.f32.mrb[0].mxu0
      %v741 = vpop.f32.mrb[0].mxu0
      %v742 = vadd.f32 %v385, %v741
      %v743 = vpop.f32.mrb[0].mxu0
      %744 = vmatprep.mubr.bf16.mxu0 0
      %745 = vmatmul.mubr.bf16.gmra.mrb[0].mxu0 %v473
      %v746 = vpop.f32.mrb[0].mxu0
      %v747 = vadd.f32 %v385, %v746
      %v748 = vpop.f32.mrb[0].mxu0
      %v749 = vpop.f32.mrb[0].mxu0
      %v750 = vadd.f32 %v385, %v749
      %v751 = vpop.f32.mrb[0].mxu0
      %752 = vmatprep.mubr.bf16.mxu0 0
      %753 = vmatmul.mubr.bf16.gmra.mrb[0].mxu0 %v476
      %v754 = vpop.f32.mrb[0].mxu0
      %v755 = vadd.f32 %v385, %v754
      %v756 = vpop.f32.mrb[0].mxu0
      %v757 = vpop.f32.mrb[0].mxu0
      %v758 = vadd.f32 %v385, %v757
      %v759 = vpop.f32.mrb[0].mxu0
      %760 = vmatprep.mubr.bf16.mxu0 0
      %761 = vmatmul.mubr.bf16.gmra.mrb[0].mxu0 %v479
      %v762 = vpop.f32.mrb[0].mxu0
      %v763 = vadd.f32 %v385, %v762
      %v764 = vpop.f32.mrb[0].mxu0
      %v765 = vpop.f32.mrb[0].mxu0
      %v766 = vadd.f32 %v385, %v765
      %v767 = vpop.f32.mrb[0].mxu0
      %768 = vmatprep.mubr.bf16.mxu0 0
      %769 = vmatmul.mubr.bf16.gmra.mrb[0].mxu0 %v482
      %v770 = vpop.f32.mrb[0].mxu0
      %v771 = vadd.f32 %v385, %v770
      %v772 = vpop.f32.mrb[0].mxu0
      %v773 = vpop.f32.mrb[0].mxu0
      %v774 = vadd.f32 %v385, %v773
      %v775 = vpop.f32.mrb[0].mxu0
      %776 = vdwg.mxu0
      %v777 = vmax.f32 %v523, 0.0
      %v778 = vmax.f32 %v526, 0.0
      %v779 = vmax.f32 %v531, 0.0
      %v780 = vmax.f32 %v534, 0.0
      %v781 = vmax.f32 %v539, 0.0
      %v782 = vmax.f32 %v542, 0.0
      %v783 = vmax.f32 %v547, 0.0
      %v784 = vmax.f32 %v550, 0.0
      %v785 = vmax.f32 %v555, 0.0
      %v786 = vmax.f32 %v558, 0.0
      %v787 = vmax.f32 %v563, 0.0
      %v788 = vmax.f32 %v566, 0.0
      %v789 = vmax.f32 %v571, 0.0
      %v790 = vmax.f32 %v574, 0.0
      %v791 = vmax.f32 %v579, 0.0
      %v792 = vmax.f32 %v582, 0.0
      %v793 = vmax.f32 %v587, 0.0
      %v794 = vmax.f32 %v590, 0.0
      %v795 = vmax.f32 %v595, 0.0
      %v796 = vmax.f32 %v598, 0.0
      %v797 = vmax.f32 %v603, 0.0
      %v798 = vmax.f32 %v606, 0.0
      %v799 = vmax.f32 %v611, 0.0
      %v800 = vmax.f32 %v614, 0.0
      %v801 = vmax.f32 %v619, 0.0
      %v802 = vmax.f32 %v622, 0.0
      %v803 = vmax.f32 %v627, 0.0
      %v804 = vmax.f32 %v630, 0.0
      %v805 = vmax.f32 %v635, 0.0
      %v806 = vmax.f32 %v638, 0.0
      %v807 = vmax.f32 %v643, 0.0
      %v808 = vmax.f32 %v646, 0.0
      %v809 = vmax.f32 %v651, 0.0
      %v810 = vmax.f32 %v654, 0.0
      %v811 = vmax.f32 %v659, 0.0
      %v812 = vmax.f32 %v662, 0.0
      %v813 = vmax.f32 %v667, 0.0
      %v814 = vmax.f32 %v670, 0.0
      %v815 = vmax.f32 %v675, 0.0
      %v816 = vmax.f32 %v678, 0.0
      %v817 = vmax.f32 %v683, 0.0
      %v818 = vmax.f32 %v686, 0.0
      %v819 = vmax.f32 %v691, 0.0
      %v820 = vmax.f32 %v694, 0.0
      %v821 = vmax.f32 %v699, 0.0
      %v822 = vmax.f32 %v702, 0.0
      %v823 = vmax.f32 %v707, 0.0
      %v824 = vmax.f32 %v710, 0.0
      %v825 = vmax.f32 %v715, 0.0
      %v826 = vmax.f32 %v718, 0.0
      %v827 = vmax.f32 %v723, 0.0
      %v828 = vmax.f32 %v726, 0.0
      %v829 = vmax.f32 %v731, 0.0
      %v830 = vmax.f32 %v734, 0.0
      %v831 = vmax.f32 %v739, 0.0
      %v832 = vmax.f32 %v742, 0.0
      %v833 = vmax.f32 %v747, 0.0
      %v834 = vmax.f32 %v750, 0.0
      %v835 = vmax.f32 %v755, 0.0
      %v836 = vmax.f32 %v758, 0.0
      %v837 = vmax.f32 %v763, 0.0
      %v838 = vmax.f32 %v766, 0.0
      %v839 = vmax.f32 %v771, 0.0
      %v840 = vmax.f32 %v774, 0.0
      %v841 = vpack.c.bf16 %v778, %v777
      %v842 = vpack.c.bf16 %v780, %v779
      %v843 = vpack.c.bf16 %v782, %v781
      %v844 = vpack.c.bf16 %v784, %v783
      %v845 = vpack.c.bf16 %v786, %v785
      %v846 = vpack.c.bf16 %v788, %v787
      %v847 = vpack.c.bf16 %v790, %v789
      %v848 = vpack.c.bf16 %v792, %v791
      %v849 = vpack.c.bf16 %v794, %v793
      %v850 = vpack.c.bf16 %v796, %v795
      %v851 = vpack.c.bf16 %v798, %v797
      %v852 = vpack.c.bf16 %v800, %v799
      %v853 = vpack.c.bf16 %v802, %v801
      %v854 = vpack.c.bf16 %v804, %v803
      %v855 = vpack.c.bf16 %v806, %v805
      %v856 = vpack.c.bf16 %v808, %v807
      %v857 = vpack.c.bf16 %v810, %v809
      %v858 = vpack.c.bf16 %v812, %v811
      %v859 = vpack.c.bf16 %v814, %v813
      %v860 = vpack.c.bf16 %v816, %v815
      %v861 = vpack.c.bf16 %v818, %v817
      %v862 = vpack.c.bf16 %v820, %v819
      %v863 = vpack.c.bf16 %v822, %v821
      %v864 = vpack.c.bf16 %v824, %v823
      %v865 = vpack.c.bf16 %v826, %v825
      %v866 = vpack.c.bf16 %v828, %v827
      %v867 = vpack.c.bf16 %v830, %v829
      %v868 = vpack.c.bf16 %v832, %v831
      %v869 = vpack.c.bf16 %v834, %v833
      %v870 = vpack.c.bf16 %v836, %v835
      %v871 = vpack.c.bf16 %v838, %v837
      %v872 = vpack.c.bf16 %v840, %v839
      %v873 = vld [vmem:[%s3] sm:$0xf]
      %v874 = vld [vmem:[%s3 + $0x4] sm:$0xf]
      %v875 = vld [vmem:[%s3 + $0x8] sm:$0xf]
      %v876 = vld [vmem:[%s3 + $0xc] sm:$0xf]
      %v877 = vld [vmem:[%s3 + $0x10] sm:$0xf]
      %v878 = vld [vmem:[%s3 + $0x14] sm:$0xf]
      %v879 = vld [vmem:[%s3 + $0x18] sm:$0xf]
      %v880 = vld [vmem:[%s3 + $0x1c] sm:$0xf]
      %v881 = vld [vmem:[%s3 + $0x20] sm:$0xf]
      %v882 = vld [vmem:[%s3 + $0x24] sm:$0xf]
      %v883 = vld [vmem:[%s3 + $0x28] sm:$0xf]
      %v884 = vld [vmem:[%s3 + $0x2c] sm:$0xf]
      %v885 = vld [vmem:[%s3 + $0x30] sm:$0xf]
      %v886 = vld [vmem:[%s3 + $0x34] sm:$0xf]
      %v887 = vld [vmem:[%s3 + $0x38] sm:$0xf]
      %v888 = vld [vmem:[%s3 + $0x3c] sm:$0xf]
      %v889 = vld [vmem:[%s4] sm:$0x1]
      %v891 = vlaneseq
      %v892 = vshrl.u32 %v891, 7
      %v893 = vsub.s32 0, %v892
      %v894 = vrot.slane %v889, %v893
      %v912 = vunpack.c.l.b16 %v873
      %v913 = vunpack.c.l.b16 %v874
      %v914 = vunpack.c.l.b16 %v875
      %v915 = vunpack.c.l.b16 %v876
      %v916 = vunpack.c.l.b16 %v877
      %v917 = vunpack.c.l.b16 %v878
      %v918 = vunpack.c.l.b16 %v879
      %v919 = vunpack.c.l.b16 %v880
      %v920 = vunpack.c.l.b16 %v881
      %v921 = vunpack.c.l.b16 %v882
      %v922 = vunpack.c.l.b16 %v883
      %v923 = vunpack.c.l.b16 %v884
      %v924 = vunpack.c.l.b16 %v885
      %v925 = vunpack.c.l.b16 %v886
      %v926 = vunpack.c.l.b16 %v887
      %v927 = vunpack.c.l.b16 %v888
      %v928 = vpack.c.b16 %v913, %v912
      %v929 = vpack.c.b16 %v915, %v914
      %v930 = vpack.c.b16 %v917, %v916
      %v931 = vpack.c.b16 %v919, %v918
      %v932 = vpack.c.b16 %v921, %v920
      %v933 = vpack.c.b16 %v923, %v922
      %v934 = vpack.c.b16 %v925, %v924
      %v935 = vpack.c.b16 %v927, %v926
      %944 = vmatprep.subr.bf16.mxu0 0
      %945 = vmatpush1.bf16.msra.mxu0 %v928
      %946 = vmatprep.subr.bf16.mxu0 0
      %947 = vmatpush1.bf16.msra.mxu0 %v929
      %948 = vmatprep.subr.bf16.mxu0 0
      %949 = vmatpush1.bf16.msra.mxu0 %v930
      %950 = vmatprep.subr.bf16.mxu0 0
      %951 = vmatpush1.bf16.msra.mxu0 %v931
      %952 = vmatprep.subr.bf16.mxu0 0
      %953 = vmatpush1.bf16.msra.mxu0 %v932
      %954 = vmatprep.subr.bf16.mxu0 0
      %955 = vmatpush1.bf16.msra.mxu0 %v933
      %956 = vmatprep.subr.bf16.mxu0 0
      %957 = vmatpush1.bf16.msra.mxu0 %v934
      %958 = vmatprep.subr.bf16.mxu0 0
      %959 = vmatpush1.bf16.msra.mxu0 %v935
      %960 = vmatprep.subr.bf16.mxu0 0
      %961 = vmatpush1.bf16.msra.mxu0 0
      %962 = vmatprep.subr.bf16.mxu0 0
      %963 = vmatpush1.bf16.msra.mxu0 0
      %964 = vmatprep.subr.bf16.mxu0 0
      %965 = vmatpush1.bf16.msra.mxu0 0
      %966 = vmatprep.subr.bf16.mxu0 0
      %967 = vmatpush1.bf16.msra.mxu0 0
      %968 = vmatprep.subr.bf16.mxu0 0
      %969 = vmatpush1.bf16.msra.mxu0 0
      %970 = vmatprep.subr.bf16.mxu0 0
      %971 = vmatpush1.bf16.msra.mxu0 0
      %972 = vmatprep.subr.bf16.mxu0 0
      %973 = vmatpush1.bf16.msra.mxu0 0
      %974 = vmatprep.subr.bf16.mxu0 0
      %975 = vmatpush1.bf16.msra.mxu0 0
      %976 = vmatprep.mubr.bf16.mxu0 0
      %977 = vmatmul.mubr.bf16.gmra.mrb[0].mxu0 %v841
      %v978 = vpop.f32.mrb[0].mxu0
      %v979 = vadd.f32 %v894, %v978
      %v980 = vpop.f32.mrb[0].mxu0
      %v981 = vpop.f32.mrb[0].mxu0
      %v982 = vadd.f32 %v894, %v981
      %v983 = vpop.f32.mrb[0].mxu0
      %984 = vmatprep.mubr.bf16.mxu0 0
      %985 = vmatmul.mubr.bf16.gmra.mrb[0].mxu0 %v842
      %v986 = vpop.f32.mrb[0].mxu0
      %v987 = vadd.f32 %v894, %v986
      %v988 = vpop.f32.mrb[0].mxu0
      %v989 = vpop.f32.mrb[0].mxu0
      %v990 = vadd.f32 %v894, %v989
      %v991 = vpop.f32.mrb[0].mxu0
      %992 = vmatprep.mubr.bf16.mxu0 0
      %993 = vmatmul.mubr.bf16.gmra.mrb[0].mxu0 %v843
      %v994 = vpop.f32.mrb[0].mxu0
      %v995 = vadd.f32 %v894, %v994
      %v996 = vpop.f32.mrb[0].mxu0
      %v997 = vpop.f32.mrb[0].mxu0
      %v998 = vadd.f32 %v894, %v997
      %v999 = vpop.f32.mrb[0].mxu0
      %1000 = vmatprep.mubr.bf16.mxu0 0
      %1001 = vmatmul.mubr.bf16.gmra.mrb[0].mxu0 %v844
      %v1002 = vpop.f32.mrb[0].mxu0
      %v1003 = vadd.f32 %v894, %v1002
      %v1004 = vpop.f32.mrb[0].mxu0
      %v1005 = vpop.f32.mrb[0].mxu0
      %v1006 = vadd.f32 %v894, %v1005
      %v1007 = vpop.f32.mrb[0].mxu0
      %1008 = vmatprep.mubr.bf16.mxu0 0
      %1009 = vmatmul.mubr.bf16.gmra.mrb[0].mxu0 %v845
      %v1010 = vpop.f32.mrb[0].mxu0
      %v1011 = vadd.f32 %v894, %v1010
      %v1012 = vpop.f32.mrb[0].mxu0
      %v1013 = vpop.f32.mrb[0].mxu0
      %v1014 = vadd.f32 %v894, %v1013
      %v1015 = vpop.f32.mrb[0].mxu0
      %1016 = vmatprep.mubr.bf16.mxu0 0
      %1017 = vmatmul.mubr.bf16.gmra.mrb[0].mxu0 %v846
      %v1018 = vpop.f32.mrb[0].mxu0
      %v1019 = vadd.f32 %v894, %v1018
      %v1020 = vpop.f32.mrb[0].mxu0
      %v1021 = vpop.f32.mrb[0].mxu0
      %v1022 = vadd.f32 %v894, %v1021
      %v1023 = vpop.f32.mrb[0].mxu0
      %1024 = vmatprep.mubr.bf16.mxu0 0
      %1025 = vmatmul.mubr.bf16.gmra.mrb[0].mxu0 %v847
      %v1026 = vpop.f32.mrb[0].mxu0
      %v1027 = vadd.f32 %v894, %v1026
      %v1028 = vpop.f32.mrb[0].mxu0
      %v1029 = vpop.f32.mrb[0].mxu0
      %v1030 = vadd.f32 %v894, %v1029
      %v1031 = vpop.f32.mrb[0].mxu0
      %1032 = vmatprep.mubr.bf16.mxu0 0
      %1033 = vmatmul.mubr.bf16.gmra.mrb[0].mxu0 %v848
      %v1034 = vpop.f32.mrb[0].mxu0
      %v1035 = vadd.f32 %v894, %v1034
      %v1036 = vpop.f32.mrb[0].mxu0
      %v1037 = vpop.f32.mrb[0].mxu0
      %v1038 = vadd.f32 %v894, %v1037
      %v1039 = vpop.f32.mrb[0].mxu0
      %1040 = vmatprep.mubr.bf16.mxu0 0
      %1041 = vmatmul.mubr.bf16.gmra.mrb[0].mxu0 %v849
      %v1042 = vpop.f32.mrb[0].mxu0
      %v1043 = vadd.f32 %v894, %v1042
      %v1044 = vpop.f32.mrb[0].mxu0
      %v1045 = vpop.f32.mrb[0].mxu0
      %v1046 = vadd.f32 %v894, %v1045
      %v1047 = vpop.f32.mrb[0].mxu0
      %1048 = vmatprep.mubr.bf16.mxu0 0
      %1049 = vmatmul.mubr.bf16.gmra.mrb[0].mxu0 %v850
      %v1050 = vpop.f32.mrb[0].mxu0
      %v1051 = vadd.f32 %v894, %v1050
      %v1052 = vpop.f32.mrb[0].mxu0
      %v1053 = vpop.f32.mrb[0].mxu0
      %v1054 = vadd.f32 %v894, %v1053
      %v1055 = vpop.f32.mrb[0].mxu0
      %1056 = vmatprep.mubr.bf16.mxu0 0
      %1057 = vmatmul.mubr.bf16.gmra.mrb[0].mxu0 %v851
      %v1058 = vpop.f32.mrb[0].mxu0
      %v1059 = vadd.f32 %v894, %v1058
      %v1060 = vpop.f32.mrb[0].mxu0
      %v1061 = vpop.f32.mrb[0].mxu0
      %v1062 = vadd.f32 %v894, %v1061
      %v1063 = vpop.f32.mrb[0].mxu0
      %1064 = vmatprep.mubr.bf16.mxu0 0
      %1065 = vmatmul.mubr.bf16.gmra.mrb[0].mxu0 %v852
      %v1066 = vpop.f32.mrb[0].mxu0
      %v1067 = vadd.f32 %v894, %v1066
      %v1068 = vpop.f32.mrb[0].mxu0
      %v1069 = vpop.f32.mrb[0].mxu0
      %v1070 = vadd.f32 %v894, %v1069
      %v1071 = vpop.f32.mrb[0].mxu0
      %1072 = vmatprep.mubr.bf16.mxu0 0
      %1073 = vmatmul.mubr.bf16.gmra.mrb[0].mxu0 %v853
      %v1074 = vpop.f32.mrb[0].mxu0
      %v1075 = vadd.f32 %v894, %v1074
      %v1076 = vpop.f32.mrb[0].mxu0
      %v1077 = vpop.f32.mrb[0].mxu0
      %v1078 = vadd.f32 %v894, %v1077
      %v1079 = vpop.f32.mrb[0].mxu0
      %1080 = vmatprep.mubr.bf16.mxu0 0
      %1081 = vmatmul.mubr.bf16.gmra.mrb[0].mxu0 %v854
      %v1082 = vpop.f32.mrb[0].mxu0
      %v1083 = vadd.f32 %v894, %v1082
      %v1084 = vpop.f32.mrb[0].mxu0
      %v1085 = vpop.f32.mrb[0].mxu0
      %v1086 = vadd.f32 %v894, %v1085
      %v1087 = vpop.f32.mrb[0].mxu0
      %1088 = vmatprep.mubr.bf16.mxu0 0
      %1089 = vmatmul.mubr.bf16.gmra.mrb[0].mxu0 %v855
      %v1090 = vpop.f32.mrb[0].mxu0
      %v1091 = vadd.f32 %v894, %v1090
      %v1092 = vpop.f32.mrb[0].mxu0
      %v1093 = vpop.f32.mrb[0].mxu0
      %v1094 = vadd.f32 %v894, %v1093
      %v1095 = vpop.f32.mrb[0].mxu0
      %1096 = vmatprep.mubr.bf16.mxu0 0
      %1097 = vmatmul.mubr.bf16.gmra.mrb[0].mxu0 %v856
      %v1098 = vpop.f32.mrb[0].mxu0
      %v1099 = vadd.f32 %v894, %v1098
      %v1100 = vpop.f32.mrb[0].mxu0
      %v1101 = vpop.f32.mrb[0].mxu0
      %v1102 = vadd.f32 %v894, %v1101
      %v1103 = vpop.f32.mrb[0].mxu0
      %1104 = vmatprep.mubr.bf16.mxu0 0
      %1105 = vmatmul.mubr.bf16.gmra.mrb[0].mxu0 %v857
      %v1106 = vpop.f32.mrb[0].mxu0
      %v1107 = vadd.f32 %v894, %v1106
      %v1108 = vpop.f32.mrb[0].mxu0
      %v1109 = vpop.f32.mrb[0].mxu0
      %v1110 = vadd.f32 %v894, %v1109
      %v1111 = vpop.f32.mrb[0].mxu0
      %1112 = vmatprep.mubr.bf16.mxu0 0
      %1113 = vmatmul.mubr.bf16.gmra.mrb[0].mxu0 %v858
      %v1114 = vpop.f32.mrb[0].mxu0
      %v1115 = vadd.f32 %v894, %v1114
      %v1116 = vpop.f32.mrb[0].mxu0
      %v1117 = vpop.f32.mrb[0].mxu0
      %v1118 = vadd.f32 %v894, %v1117
      %v1119 = vpop.f32.mrb[0].mxu0
      %1120 = vmatprep.mubr.bf16.mxu0 0
      %1121 = vmatmul.mubr.bf16.gmra.mrb[0].mxu0 %v859
      %v1122 = vpop.f32.mrb[0].mxu0
      %v1123 = vadd.f32 %v894, %v1122
      %v1124 = vpop.f32.mrb[0].mxu0
      %v1125 = vpop.f32.mrb[0].mxu0
      %v1126 = vadd.f32 %v894, %v1125
      %v1127 = vpop.f32.mrb[0].mxu0
      %1128 = vmatprep.mubr.bf16.mxu0 0
      %1129 = vmatmul.mubr.bf16.gmra.mrb[0].mxu0 %v860
      %v1130 = vpop.f32.mrb[0].mxu0
      %v1131 = vadd.f32 %v894, %v1130
      %v1132 = vpop.f32.mrb[0].mxu0
      %v1133 = vpop.f32.mrb[0].mxu0
      %v1134 = vadd.f32 %v894, %v1133
      %v1135 = vpop.f32.mrb[0].mxu0
      %1136 = vmatprep.mubr.bf16.mxu0 0
      %1137 = vmatmul.mubr.bf16.gmra.mrb[0].mxu0 %v861
      %v1138 = vpop.f32.mrb[0].mxu0
      %v1139 = vadd.f32 %v894, %v1138
      %v1140 = vpop.f32.mrb[0].mxu0
      %v1141 = vpop.f32.mrb[0].mxu0
      %v1142 = vadd.f32 %v894, %v1141
      %v1143 = vpop.f32.mrb[0].mxu0
      %1144 = vmatprep.mubr.bf16.mxu0 0
      %1145 = vmatmul.mubr.bf16.gmra.mrb[0].mxu0 %v862
      %v1146 = vpop.f32.mrb[0].mxu0
      %v1147 = vadd.f32 %v894, %v1146
      %v1148 = vpop.f32.mrb[0].mxu0
      %v1149 = vpop.f32.mrb[0].mxu0
      %v1150 = vadd.f32 %v894, %v1149
      %v1151 = vpop.f32.mrb[0].mxu0
      %1152 = vmatprep.mubr.bf16.mxu0 0
      %1153 = vmatmul.mubr.bf16.gmra.mrb[0].mxu0 %v863
      %v1154 = vpop.f32.mrb[0].mxu0
      %v1155 = vadd.f32 %v894, %v1154
      %v1156 = vpop.f32.mrb[0].mxu0
      %v1157 = vpop.f32.mrb[0].mxu0
      %v1158 = vadd.f32 %v894, %v1157
      %v1159 = vpop.f32.mrb[0].mxu0
      %1160 = vmatprep.mubr.bf16.mxu0 0
      %1161 = vmatmul.mubr.bf16.gmra.mrb[0].mxu0 %v864
      %v1162 = vpop.f32.mrb[0].mxu0
      %v1163 = vadd.f32 %v894, %v1162
      %v1164 = vpop.f32.mrb[0].mxu0
      %v1165 = vpop.f32.mrb[0].mxu0
      %v1166 = vadd.f32 %v894, %v1165
      %v1167 = vpop.f32.mrb[0].mxu0
      %1168 = vmatprep.mubr.bf16.mxu0 0
      %1169 = vmatmul.mubr.bf16.gmra.mrb[0].mxu0 %v865
      %v1170 = vpop.f32.mrb[0].mxu0
      %v1171 = vadd.f32 %v894, %v1170
      %v1172 = vpop.f32.mrb[0].mxu0
      %v1173 = vpop.f32.mrb[0].mxu0
      %v1174 = vadd.f32 %v894, %v1173
      %v1175 = vpop.f32.mrb[0].mxu0
      %1176 = vmatprep.mubr.bf16.mxu0 0
      %1177 = vmatmul.mubr.bf16.gmra.mrb[0].mxu0 %v866
      %v1178 = vpop.f32.mrb[0].mxu0
      %v1179 = vadd.f32 %v894, %v1178
      %v1180 = vpop.f32.mrb[0].mxu0
      %v1181 = vpop.f32.mrb[0].mxu0
      %v1182 = vadd.f32 %v894, %v1181
      %v1183 = vpop.f32.mrb[0].mxu0
      %1184 = vmatprep.mubr.bf16.mxu0 0
      %1185 = vmatmul.mubr.bf16.gmra.mrb[0].mxu0 %v867
      %v1186 = vpop.f32.mrb[0].mxu0
      %v1187 = vadd.f32 %v894, %v1186
      %v1188 = vpop.f32.mrb[0].mxu0
      %v1189 = vpop.f32.mrb[0].mxu0
      %v1190 = vadd.f32 %v894, %v1189
      %v1191 = vpop.f32.mrb[0].mxu0
      %1192 = vmatprep.mubr.bf16.mxu0 0
      %1193 = vmatmul.mubr.bf16.gmra.mrb[0].mxu0 %v868
      %v1194 = vpop.f32.mrb[0].mxu0
      %v1195 = vadd.f32 %v894, %v1194
      %v1196 = vpop.f32.mrb[0].mxu0
      %v1197 = vpop.f32.mrb[0].mxu0
      %v1198 = vadd.f32 %v894, %v1197
      %v1199 = vpop.f32.mrb[0].mxu0
      %1200 = vmatprep.mubr.bf16.mxu0 0
      %1201 = vmatmul.mubr.bf16.gmra.mrb[0].mxu0 %v869
      %v1202 = vpop.f32.mrb[0].mxu0
      %v1203 = vadd.f32 %v894, %v1202
      %v1204 = vpop.f32.mrb[0].mxu0
      %v1205 = vpop.f32.mrb[0].mxu0
      %v1206 = vadd.f32 %v894, %v1205
      %v1207 = vpop.f32.mrb[0].mxu0
      %1208 = vmatprep.mubr.bf16.mxu0 0
      %1209 = vmatmul.mubr.bf16.gmra.mrb[0].mxu0 %v870
      %v1210 = vpop.f32.mrb[0].mxu0
      %v1211 = vadd.f32 %v894, %v1210
      %v1212 = vpop.f32.mrb[0].mxu0
      %v1213 = vpop.f32.mrb[0].mxu0
      %v1214 = vadd.f32 %v894, %v1213
      %v1215 = vpop.f32.mrb[0].mxu0
      %1216 = vmatprep.mubr.bf16.mxu0 0
      %1217 = vmatmul.mubr.bf16.gmra.mrb[0].mxu0 %v871
      %v1218 = vpop.f32.mrb[0].mxu0
      %v1219 = vadd.f32 %v894, %v1218
      %v1220 = vpop.f32.mrb[0].mxu0
      %v1221 = vpop.f32.mrb[0].mxu0
      %v1222 = vadd.f32 %v894, %v1221
      %v1223 = vpop.f32.mrb[0].mxu0
      %1224 = vmatprep.mubr.bf16.mxu0 0
      %1225 = vmatmul.mubr.bf16.gmra.mrb[0].mxu0 %v872
      %v1226 = vpop.f32.mrb[0].mxu0
      %v1227 = vadd.f32 %v894, %v1226
      %v1228 = vpop.f32.mrb[0].mxu0
      %v1229 = vpop.f32.mrb[0].mxu0
      %v1230 = vadd.f32 %v894, %v1229
      %v1231 = vpop.f32.mrb[0].mxu0
      %1232 = vdwg.mxu0
      %v1233 = vmax.f32 %v979, 0.0
      %v1234 = vmax.f32 %v982, 0.0
      %v1235 = vmax.f32 %v987, 0.0
      %v1236 = vmax.f32 %v990, 0.0
      %v1237 = vmax.f32 %v995, 0.0
      %v1238 = vmax.f32 %v998, 0.0
      %v1239 = vmax.f32 %v1003, 0.0
      %v1240 = vmax.f32 %v1006, 0.0
      %v1241 = vmax.f32 %v1011, 0.0
      %v1242 = vmax.f32 %v1014, 0.0
      %v1243 = vmax.f32 %v1019, 0.0
      %v1244 = vmax.f32 %v1022, 0.0
      %v1245 = vmax.f32 %v1027, 0.0
      %v1246 = vmax.f32 %v1030, 0.0
      %v1247 = vmax.f32 %v1035, 0.0
      %v1248 = vmax.f32 %v1038, 0.0
      %v1249 = vmax.f32 %v1043, 0.0
      %v1250 = vmax.f32 %v1046, 0.0
      %v1251 = vmax.f32 %v1051, 0.0
      %v1252 = vmax.f32 %v1054, 0.0
      %v1253 = vmax.f32 %v1059, 0.0
      %v1254 = vmax.f32 %v1062, 0.0
      %v1255 = vmax.f32 %v1067, 0.0
      %v1256 = vmax.f32 %v1070, 0.0
      %v1257 = vmax.f32 %v1075, 0.0
      %v1258 = vmax.f32 %v1078, 0.0
      %v1259 = vmax.f32 %v1083, 0.0
      %v1260 = vmax.f32 %v1086, 0.0
      %v1261 = vmax.f32 %v1091, 0.0
      %v1262 = vmax.f32 %v1094, 0.0
      %v1263 = vmax.f32 %v1099, 0.0
      %v1264 = vmax.f32 %v1102, 0.0
      %v1265 = vmax.f32 %v1107, 0.0
      %v1266 = vmax.f32 %v1110, 0.0
      %v1267 = vmax.f32 %v1115, 0.0
      %v1268 = vmax.f32 %v1118, 0.0
      %v1269 = vmax.f32 %v1123, 0.0
      %v1270 = vmax.f32 %v1126, 0.0
      %v1271 = vmax.f32 %v1131, 0.0
      %v1272 = vmax.f32 %v1134, 0.0
      %v1273 = vmax.f32 %v1139, 0.0
      %v1274 = vmax.f32 %v1142, 0.0
      %v1275 = vmax.f32 %v1147, 0.0
      %v1276 = vmax.f32 %v1150, 0.0
      %v1277 = vmax.f32 %v1155, 0.0
      %v1278 = vmax.f32 %v1158, 0.0
      %v1279 = vmax.f32 %v1163, 0.0
      %v1280 = vmax.f32 %v1166, 0.0
      %v1281 = vmax.f32 %v1171, 0.0
      %v1282 = vmax.f32 %v1174, 0.0
      %v1283 = vmax.f32 %v1179, 0.0
      %v1284 = vmax.f32 %v1182, 0.0
      %v1285 = vmax.f32 %v1187, 0.0
      %v1286 = vmax.f32 %v1190, 0.0
      %v1287 = vmax.f32 %v1195, 0.0
      %v1288 = vmax.f32 %v1198, 0.0
      %v1289 = vmax.f32 %v1203, 0.0
      %v1290 = vmax.f32 %v1206, 0.0
      %v1291 = vmax.f32 %v1211, 0.0
      %v1292 = vmax.f32 %v1214, 0.0
      %v1293 = vmax.f32 %v1219, 0.0
      %v1294 = vmax.f32 %v1222, 0.0
      %v1295 = vmax.f32 %v1227, 0.0
      %v1296 = vmax.f32 %v1230, 0.0
      %v1297 = vpack.c.bf16 %v1234, %v1233
      %v1298 = vpack.c.bf16 %v1236, %v1235
      %v1299 = vpack.c.bf16 %v1238, %v1237
      %v1300 = vpack.c.bf16 %v1240, %v1239
      %v1301 = vpack.c.bf16 %v1242, %v1241
      %v1302 = vpack.c.bf16 %v1244, %v1243
      %v1303 = vpack.c.bf16 %v1246, %v1245
      %v1304 = vpack.c.bf16 %v1248, %v1247
      %v1305 = vpack.c.bf16 %v1250, %v1249
      %v1306 = vpack.c.bf16 %v1252, %v1251
      %v1307 = vpack.c.bf16 %v1254, %v1253
      %v1308 = vpack.c.bf16 %v1256, %v1255
      %v1309 = vpack.c.bf16 %v1258, %v1257
      %v1310 = vpack.c.bf16 %v1260, %v1259
      %v1311 = vpack.c.bf16 %v1262, %v1261
      %v1312 = vpack.c.bf16 %v1264, %v1263
      %v1313 = vpack.c.bf16 %v1266, %v1265
      %v1314 = vpack.c.bf16 %v1268, %v1267
      %v1315 = vpack.c.bf16 %v1270, %v1269
      %v1316 = vpack.c.bf16 %v1272, %v1271
      %v1317 = vpack.c.bf16 %v1274, %v1273
      %v1318 = vpack.c.bf16 %v1276, %v1275
      %v1319 = vpack.c.bf16 %v1278, %v1277
      %v1320 = vpack.c.bf16 %v1280, %v1279
      %v1321 = vpack.c.bf16 %v1282, %v1281
      %v1322 = vpack.c.bf16 %v1284, %v1283
      %v1323 = vpack.c.bf16 %v1286, %v1285
      %v1324 = vpack.c.bf16 %v1288, %v1287
      %v1325 = vpack.c.bf16 %v1290, %v1289
      %v1326 = vpack.c.bf16 %v1292, %v1291
      %v1327 = vpack.c.bf16 %v1294, %v1293
      %v1328 = vpack.c.bf16 %v1296, %v1295
      %v1329 = vld [vmem:[%s5] sm:$0xf]
      %v1330 = vld [vmem:[%s5 + $0x4] sm:$0xf]
      %v1331 = vld [vmem:[%s5 + $0x8] sm:$0xf]
      %v1332 = vld [vmem:[%s5 + $0xc] sm:$0xf]
      %v1333 = vld [vmem:[%s5 + $0x10] sm:$0xf]
      %v1334 = vld [vmem:[%s5 + $0x14] sm:$0xf]
      %v1335 = vld [vmem:[%s5 + $0x18] sm:$0xf]
      %v1336 = vld [vmem:[%s5 + $0x1c] sm:$0xf]
      %v1337 = vld [vmem:[%s5 + $0x20] sm:$0xf]
      %v1338 = vld [vmem:[%s5 + $0x24] sm:$0xf]
      %v1339 = vld [vmem:[%s5 + $0x28] sm:$0xf]
      %v1340 = vld [vmem:[%s5 + $0x2c] sm:$0xf]
      %v1341 = vld [vmem:[%s5 + $0x30] sm:$0xf]
      %v1342 = vld [vmem:[%s5 + $0x34] sm:$0xf]
      %v1343 = vld [vmem:[%s5 + $0x38] sm:$0xf]
      %v1344 = vld [vmem:[%s5 + $0x3c] sm:$0xf]
      %v1345 = vld [vmem:[%s6] sm:$0x1]
      %v1347 = vlaneseq
      %v1348 = vshrl.u32 %v1347, 7
      %v1349 = vsub.s32 0, %v1348
      %v1350 = vrot.slane %v1345, %v1349
      %v1368 = vunpack.c.l.b16 %v1329
      %v1369 = vunpack.c.l.b16 %v1330
      %v1370 = vunpack.c.l.b16 %v1331
      %v1371 = vunpack.c.l.b16 %v1332
      %v1372 = vunpack.c.l.b16 %v1333
      %v1373 = vunpack.c.l.b16 %v1334
      %v1374 = vunpack.c.l.b16 %v1335
      %v1375 = vunpack.c.l.b16 %v1336
      %v1376 = vunpack.c.l.b16 %v1337
      %v1377 = vunpack.c.l.b16 %v1338
      %v1378 = vunpack.c.l.b16 %v1339
      %v1379 = vunpack.c.l.b16 %v1340
      %v1380 = vunpack.c.l.b16 %v1341
      %v1381 = vunpack.c.l.b16 %v1342
      %v1382 = vunpack.c.l.b16 %v1343
      %v1383 = vunpack.c.l.b16 %v1344
      %v1384 = vpack.c.b16 %v1369, %v1368
      %v1385 = vpack.c.b16 %v1371, %v1370
      %v1386 = vpack.c.b16 %v1373, %v1372
      %v1387 = vpack.c.b16 %v1375, %v1374
      %v1388 = vpack.c.b16 %v1377, %v1376
      %v1389 = vpack.c.b16 %v1379, %v1378
      %v1390 = vpack.c.b16 %v1381, %v1380
      %v1391 = vpack.c.b16 %v1383, %v1382
      %1400 = vmatprep.subr.bf16.mxu0 0
      %1401 = vmatpush1.bf16.msra.mxu0 %v1384
      %1402 = vmatprep.subr.bf16.mxu0 0
      %1403 = vmatpush1.bf16.msra.mxu0 %v1385
      %1404 = vmatprep.subr.bf16.mxu0 0
      %1405 = vmatpush1.bf16.msra.mxu0 %v1386
      %1406 = vmatprep.subr.bf16.mxu0 0
      %1407 = vmatpush1.bf16.msra.mxu0 %v1387
      %1408 = vmatprep.subr.bf16.mxu0 0
      %1409 = vmatpush1.bf16.msra.mxu0 %v1388
      %1410 = vmatprep.subr.bf16.mxu0 0
      %1411 = vmatpush1.bf16.msra.mxu0 %v1389
      %1412 = vmatprep.subr.bf16.mxu0 0
      %1413 = vmatpush1.bf16.msra.mxu0 %v1390
      %1414 = vmatprep.subr.bf16.mxu0 0
      %1415 = vmatpush1.bf16.msra.mxu0 %v1391
      %1416 = vmatprep.subr.bf16.mxu0 0
      %1417 = vmatpush1.bf16.msra.mxu0 0
      %1418 = vmatprep.subr.bf16.mxu0 0
      %1419 = vmatpush1.bf16.msra.mxu0 0
      %1420 = vmatprep.subr.bf16.mxu0 0
      %1421 = vmatpush1.bf16.msra.mxu0 0
      %1422 = vmatprep.subr.bf16.mxu0 0
      %1423 = vmatpush1.bf16.msra.mxu0 0
      %1424 = vmatprep.subr.bf16.mxu0 0
      %1425 = vmatpush1.bf16.msra.mxu0 0
      %1426 = vmatprep.subr.bf16.mxu0 0
      %1427 = vmatpush1.bf16.msra.mxu0 0
      %1428 = vmatprep.subr.bf16.mxu0 0
      %1429 = vmatpush1.bf16.msra.mxu0 0
      %1430 = vmatprep.subr.bf16.mxu0 0
      %1431 = vmatpush1.bf16.msra.mxu0 0
      %1432 = vmatprep.mubr.bf16.mxu0 0
      %1433 = vmatmul.mubr.bf16.gmra.mrb[0].mxu0 %v1297
      %v1434 = vpop.f32.mrb[0].mxu0
      %v1435 = vadd.f32 %v1350, %v1434
      %v1436 = vpop.f32.mrb[0].mxu0
      %v1437 = vpop.f32.mrb[0].mxu0
      %v1438 = vadd.f32 %v1350, %v1437
      %v1439 = vpop.f32.mrb[0].mxu0
      %1440 = vmatprep.mubr.bf16.mxu0 0
      %1441 = vmatmul.mubr.bf16.gmra.mrb[0].mxu0 %v1298
      %v1442 = vpop.f32.mrb[0].mxu0
      %v1443 = vadd.f32 %v1350, %v1442
      %v1444 = vpop.f32.mrb[0].mxu0
      %v1445 = vpop.f32.mrb[0].mxu0
      %v1446 = vadd.f32 %v1350, %v1445
      %v1447 = vpop.f32.mrb[0].mxu0
      %1448 = vmatprep.mubr.bf16.mxu0 0
      %1449 = vmatmul.mubr.bf16.gmra.mrb[0].mxu0 %v1299
      %v1450 = vpop.f32.mrb[0].mxu0
      %v1451 = vadd.f32 %v1350, %v1450
      %v1452 = vpop.f32.mrb[0].mxu0
      %v1453 = vpop.f32.mrb[0].mxu0
      %v1454 = vadd.f32 %v1350, %v1453
      %v1455 = vpop.f32.mrb[0].mxu0
      %1456 = vmatprep.mubr.bf16.mxu0 0
      %1457 = vmatmul.mubr.bf16.gmra.mrb[0].mxu0 %v1300
      %v1458 = vpop.f32.mrb[0].mxu0
      %v1459 = vadd.f32 %v1350, %v1458
      %v1460 = vpop.f32.mrb[0].mxu0
      %v1461 = vpop.f32.mrb[0].mxu0
      %v1462 = vadd.f32 %v1350, %v1461
      %v1463 = vpop.f32.mrb[0].mxu0
      %1464 = vmatprep.mubr.bf16.mxu0 0
      %1465 = vmatmul.mubr.bf16.gmra.mrb[0].mxu0 %v1301
      %v1466 = vpop.f32.mrb[0].mxu0
      %v1467 = vadd.f32 %v1350, %v1466
      %v1468 = vpop.f32.mrb[0].mxu0
      %v1469 = vpop.f32.mrb[0].mxu0
      %v1470 = vadd.f32 %v1350, %v1469
      %v1471 = vpop.f32.mrb[0].mxu0
      %1472 = vmatprep.mubr.bf16.mxu0 0
      %1473 = vmatmul.mubr.bf16.gmra.mrb[0].mxu0 %v1302
      %v1474 = vpop.f32.mrb[0].mxu0
      %v1475 = vadd.f32 %v1350, %v1474
      %v1476 = vpop.f32.mrb[0].mxu0
      %v1477 = vpop.f32.mrb[0].mxu0
      %v1478 = vadd.f32 %v1350, %v1477
      %v1479 = vpop.f32.mrb[0].mxu0
      %1480 = vmatprep.mubr.bf16.mxu0 0
      %1481 = vmatmul.mubr.bf16.gmra.mrb[0].mxu0 %v1303
      %v1482 = vpop.f32.mrb[0].mxu0
      %v1483 = vadd.f32 %v1350, %v1482
      %v1484 = vpop.f32.mrb[0].mxu0
      %v1485 = vpop.f32.mrb[0].mxu0
      %v1486 = vadd.f32 %v1350, %v1485
      %v1487 = vpop.f32.mrb[0].mxu0
      %1488 = vmatprep.mubr.bf16.mxu0 0
      %1489 = vmatmul.mubr.bf16.gmra.mrb[0].mxu0 %v1304
      %v1490 = vpop.f32.mrb[0].mxu0
      %v1491 = vadd.f32 %v1350, %v1490
      %v1492 = vpop.f32.mrb[0].mxu0
      %v1493 = vpop.f32.mrb[0].mxu0
      %v1494 = vadd.f32 %v1350, %v1493
      %v1495 = vpop.f32.mrb[0].mxu0
      %1496 = vmatprep.mubr.bf16.mxu0 0
      %1497 = vmatmul.mubr.bf16.gmra.mrb[0].mxu0 %v1305
      %v1498 = vpop.f32.mrb[0].mxu0
      %v1499 = vadd.f32 %v1350, %v1498
      %v1500 = vpop.f32.mrb[0].mxu0
      %v1501 = vpop.f32.mrb[0].mxu0
      %v1502 = vadd.f32 %v1350, %v1501
      %v1503 = vpop.f32.mrb[0].mxu0
      %1504 = vmatprep.mubr.bf16.mxu0 0
      %1505 = vmatmul.mubr.bf16.gmra.mrb[0].mxu0 %v1306
      %v1506 = vpop.f32.mrb[0].mxu0
      %v1507 = vadd.f32 %v1350, %v1506
      %v1508 = vpop.f32.mrb[0].mxu0
      %v1509 = vpop.f32.mrb[0].mxu0
      %v1510 = vadd.f32 %v1350, %v1509
      %v1511 = vpop.f32.mrb[0].mxu0
      %1512 = vmatprep.mubr.bf16.mxu0 0
      %1513 = vmatmul.mubr.bf16.gmra.mrb[0].mxu0 %v1307
      %v1514 = vpop.f32.mrb[0].mxu0
      %v1515 = vadd.f32 %v1350, %v1514
      %v1516 = vpop.f32.mrb[0].mxu0
      %v1517 = vpop.f32.mrb[0].mxu0
      %v1518 = vadd.f32 %v1350, %v1517
      %v1519 = vpop.f32.mrb[0].mxu0
      %1520 = vmatprep.mubr.bf16.mxu0 0
      %1521 = vmatmul.mubr.bf16.gmra.mrb[0].mxu0 %v1308
      %v1522 = vpop.f32.mrb[0].mxu0
      %v1523 = vadd.f32 %v1350, %v1522
      %v1524 = vpop.f32.mrb[0].mxu0
      %v1525 = vpop.f32.mrb[0].mxu0
      %v1526 = vadd.f32 %v1350, %v1525
      %v1527 = vpop.f32.mrb[0].mxu0
      %1528 = vmatprep.mubr.bf16.mxu0 0
      %1529 = vmatmul.mubr.bf16.gmra.mrb[0].mxu0 %v1309
      %v1530 = vpop.f32.mrb[0].mxu0
      %v1531 = vadd.f32 %v1350, %v1530
      %v1532 = vpop.f32.mrb[0].mxu0
      %v1533 = vpop.f32.mrb[0].mxu0
      %v1534 = vadd.f32 %v1350, %v1533
      %v1535 = vpop.f32.mrb[0].mxu0
      %1536 = vmatprep.mubr.bf16.mxu0 0
      %1537 = vmatmul.mubr.bf16.gmra.mrb[0].mxu0 %v1310
      %v1538 = vpop.f32.mrb[0].mxu0
      %v1539 = vadd.f32 %v1350, %v1538
      %v1540 = vpop.f32.mrb[0].mxu0
      %v1541 = vpop.f32.mrb[0].mxu0
      %v1542 = vadd.f32 %v1350, %v1541
      %v1543 = vpop.f32.mrb[0].mxu0
      %1544 = vmatprep.mubr.bf16.mxu0 0
      %1545 = vmatmul.mubr.bf16.gmra.mrb[0].mxu0 %v1311
      %v1546 = vpop.f32.mrb[0].mxu0
      %v1547 = vadd.f32 %v1350, %v1546
      %v1548 = vpop.f32.mrb[0].mxu0
      %v1549 = vpop.f32.mrb[0].mxu0
      %v1550 = vadd.f32 %v1350, %v1549
      %v1551 = vpop.f32.mrb[0].mxu0
      %1552 = vmatprep.mubr.bf16.mxu0 0
      %1553 = vmatmul.mubr.bf16.gmra.mrb[0].mxu0 %v1312
      %v1554 = vpop.f32.mrb[0].mxu0
      %v1555 = vadd.f32 %v1350, %v1554
      %v1556 = vpop.f32.mrb[0].mxu0
      %v1557 = vpop.f32.mrb[0].mxu0
      %v1558 = vadd.f32 %v1350, %v1557
      %v1559 = vpop.f32.mrb[0].mxu0
      %1560 = vmatprep.mubr.bf16.mxu0 0
      %1561 = vmatmul.mubr.bf16.gmra.mrb[0].mxu0 %v1313
      %v1562 = vpop.f32.mrb[0].mxu0
      %v1563 = vadd.f32 %v1350, %v1562
      %v1564 = vpop.f32.mrb[0].mxu0
      %v1565 = vpop.f32.mrb[0].mxu0
      %v1566 = vadd.f32 %v1350, %v1565
      %v1567 = vpop.f32.mrb[0].mxu0
      %1568 = vmatprep.mubr.bf16.mxu0 0
      %1569 = vmatmul.mubr.bf16.gmra.mrb[0].mxu0 %v1314
      %v1570 = vpop.f32.mrb[0].mxu0
      %v1571 = vadd.f32 %v1350, %v1570
      %v1572 = vpop.f32.mrb[0].mxu0
      %v1573 = vpop.f32.mrb[0].mxu0
      %v1574 = vadd.f32 %v1350, %v1573
      %v1575 = vpop.f32.mrb[0].mxu0
      %1576 = vmatprep.mubr.bf16.mxu0 0
      %1577 = vmatmul.mubr.bf16.gmra.mrb[0].mxu0 %v1315
      %v1578 = vpop.f32.mrb[0].mxu0
      %v1579 = vadd.f32 %v1350, %v1578
      %v1580 = vpop.f32.mrb[0].mxu0
      %v1581 = vpop.f32.mrb[0].mxu0
      %v1582 = vadd.f32 %v1350, %v1581
      %v1583 = vpop.f32.mrb[0].mxu0
      %1584 = vmatprep.mubr.bf16.mxu0 0
      %1585 = vmatmul.mubr.bf16.gmra.mrb[0].mxu0 %v1316
      %v1586 = vpop.f32.mrb[0].mxu0
      %v1587 = vadd.f32 %v1350, %v1586
      %v1588 = vpop.f32.mrb[0].mxu0
      %v1589 = vpop.f32.mrb[0].mxu0
      %v1590 = vadd.f32 %v1350, %v1589
      %v1591 = vpop.f32.mrb[0].mxu0
      %1592 = vmatprep.mubr.bf16.mxu0 0
      %1593 = vmatmul.mubr.bf16.gmra.mrb[0].mxu0 %v1317
      %v1594 = vpop.f32.mrb[0].mxu0
      %v1595 = vadd.f32 %v1350, %v1594
      %v1596 = vpop.f32.mrb[0].mxu0
      %v1597 = vpop.f32.mrb[0].mxu0
      %v1598 = vadd.f32 %v1350, %v1597
      %v1599 = vpop.f32.mrb[0].mxu0
      %1600 = vmatprep.mubr.bf16.mxu0 0
      %1601 = vmatmul.mubr.bf16.gmra.mrb[0].mxu0 %v1318
      %v1602 = vpop.f32.mrb[0].mxu0
      %v1603 = vadd.f32 %v1350, %v1602
      %v1604 = vpop.f32.mrb[0].mxu0
      %v1605 = vpop.f32.mrb[0].mxu0
      %v1606 = vadd.f32 %v1350, %v1605
      %v1607 = vpop.f32.mrb[0].mxu0
      %1608 = vmatprep.mubr.bf16.mxu0 0
      %1609 = vmatmul.mubr.bf16.gmra.mrb[0].mxu0 %v1319
      %v1610 = vpop.f32.mrb[0].mxu0
      %v1611 = vadd.f32 %v1350, %v1610
      %v1612 = vpop.f32.mrb[0].mxu0
      %v1613 = vpop.f32.mrb[0].mxu0
      %v1614 = vadd.f32 %v1350, %v1613
      %v1615 = vpop.f32.mrb[0].mxu0
      %1616 = vmatprep.mubr.bf16.mxu0 0
      %1617 = vmatmul.mubr.bf16.gmra.mrb[0].mxu0 %v1320
      %v1618 = vpop.f32.mrb[0].mxu0
      %v1619 = vadd.f32 %v1350, %v1618
      %v1620 = vpop.f32.mrb[0].mxu0
      %v1621 = vpop.f32.mrb[0].mxu0
      %v1622 = vadd.f32 %v1350, %v1621
      %v1623 = vpop.f32.mrb[0].mxu0
      %1624 = vmatprep.mubr.bf16.mxu0 0
      %1625 = vmatmul.mubr.bf16.gmra.mrb[0].mxu0 %v1321
      %v1626 = vpop.f32.mrb[0].mxu0
      %v1627 = vadd.f32 %v1350, %v1626
      %v1628 = vpop.f32.mrb[0].mxu0
      %v1629 = vpop.f32.mrb[0].mxu0
      %v1630 = vadd.f32 %v1350, %v1629
      %v1631 = vpop.f32.mrb[0].mxu0
      %1632 = vmatprep.mubr.bf16.mxu0 0
      %1633 = vmatmul.mubr.bf16.gmra.mrb[0].mxu0 %v1322
      %v1634 = vpop.f32.mrb[0].mxu0
      %v1635 = vadd.f32 %v1350, %v1634
      %v1636 = vpop.f32.mrb[0].mxu0
      %v1637 = vpop.f32.mrb[0].mxu0
      %v1638 = vadd.f32 %v1350, %v1637
      %v1639 = vpop.f32.mrb[0].mxu0
      %1640 = vmatprep.mubr.bf16.mxu0 0
      %1641 = vmatmul.mubr.bf16.gmra.mrb[0].mxu0 %v1323
      %v1642 = vpop.f32.mrb[0].mxu0
      %v1643 = vadd.f32 %v1350, %v1642
      %v1644 = vpop.f32.mrb[0].mxu0
      %v1645 = vpop.f32.mrb[0].mxu0
      %v1646 = vadd.f32 %v1350, %v1645
      %v1647 = vpop.f32.mrb[0].mxu0
      %1648 = vmatprep.mubr.bf16.mxu0 0
      %1649 = vmatmul.mubr.bf16.gmra.mrb[0].mxu0 %v1324
      %v1650 = vpop.f32.mrb[0].mxu0
      %v1651 = vadd.f32 %v1350, %v1650
      %v1652 = vpop.f32.mrb[0].mxu0
      %v1653 = vpop.f32.mrb[0].mxu0
      %v1654 = vadd.f32 %v1350, %v1653
      %v1655 = vpop.f32.mrb[0].mxu0
      %1656 = vmatprep.mubr.bf16.mxu0 0
      %1657 = vmatmul.mubr.bf16.gmra.mrb[0].mxu0 %v1325
      %v1658 = vpop.f32.mrb[0].mxu0
      %v1659 = vadd.f32 %v1350, %v1658
      %v1660 = vpop.f32.mrb[0].mxu0
      %v1661 = vpop.f32.mrb[0].mxu0
      %v1662 = vadd.f32 %v1350, %v1661
      %v1663 = vpop.f32.mrb[0].mxu0
      %1664 = vmatprep.mubr.bf16.mxu0 0
      %1665 = vmatmul.mubr.bf16.gmra.mrb[0].mxu0 %v1326
      %v1666 = vpop.f32.mrb[0].mxu0
      %v1667 = vadd.f32 %v1350, %v1666
      %v1668 = vpop.f32.mrb[0].mxu0
      %v1669 = vpop.f32.mrb[0].mxu0
      %v1670 = vadd.f32 %v1350, %v1669
      %v1671 = vpop.f32.mrb[0].mxu0
      %1672 = vmatprep.mubr.bf16.mxu0 0
      %1673 = vmatmul.mubr.bf16.gmra.mrb[0].mxu0 %v1327
      %v1674 = vpop.f32.mrb[0].mxu0
      %v1675 = vadd.f32 %v1350, %v1674
      %v1676 = vpop.f32.mrb[0].mxu0
      %v1677 = vpop.f32.mrb[0].mxu0
      %v1678 = vadd.f32 %v1350, %v1677
      %v1679 = vpop.f32.mrb[0].mxu0
      %1680 = vmatprep.mubr.bf16.mxu0 0
      %1681 = vmatmul.mubr.bf16.gmra.mrb[0].mxu0 %v1328
      %v1682 = vpop.f32.mrb[0].mxu0
      %v1683 = vadd.f32 %v1350, %v1682
      %v1684 = vpop.f32.mrb[0].mxu0
      %v1685 = vpop.f32.mrb[0].mxu0
      %v1686 = vadd.f32 %v1350, %v1685
      %v1687 = vpop.f32.mrb[0].mxu0
      %1688 = vdwg.mxu0
      %vm1689 = vcmask 15360
      %1690 = vst.msk [vmem:[%s280] sm:$0xff] %vm1689, %v1435
      %1691 = vst.msk [vmem:[%s280 + $0x8] sm:$0xff] %vm1689, %v1438
      %1692 = vst.msk [vmem:[%s280 + $0x10] sm:$0xff] %vm1689, %v1443
      %1693 = vst.msk [vmem:[%s280 + $0x18] sm:$0xff] %vm1689, %v1446
      %1694 = vst.msk [vmem:[%s280 + $0x20] sm:$0xff] %vm1689, %v1451
      %1695 = vst.msk [vmem:[%s280 + $0x28] sm:$0xff] %vm1689, %v1454
      %1696 = vst.msk [vmem:[%s280 + $0x30] sm:$0xff] %vm1689, %v1459
      %1697 = vst.msk [vmem:[%s280 + $0x38] sm:$0xff] %vm1689, %v1462
      %1698 = vst.msk [vmem:[%s280 + $0x40] sm:$0xff] %vm1689, %v1467
      %1699 = vst.msk [vmem:[%s280 + $0x48] sm:$0xff] %vm1689, %v1470
      %1700 = vst.msk [vmem:[%s280 + $0x50] sm:$0xff] %vm1689, %v1475
      %1701 = vst.msk [vmem:[%s280 + $0x58] sm:$0xff] %vm1689, %v1478
      %1702 = vst.msk [vmem:[%s280 + $0x60] sm:$0xff] %vm1689, %v1483
      %1703 = vst.msk [vmem:[%s280 + $0x68] sm:$0xff] %vm1689, %v1486
      %1704 = vst.msk [vmem:[%s280 + $0x70] sm:$0xff] %vm1689, %v1491
      %1705 = vst.msk [vmem:[%s280 + $0x78] sm:$0xff] %vm1689, %v1494
      %1706 = vst.msk [vmem:[%s280 + $0x80] sm:$0xff] %vm1689, %v1499
      %1707 = vst.msk [vmem:[%s280 + $0x88] sm:$0xff] %vm1689, %v1502
      %1708 = vst.msk [vmem:[%s280 + $0x90] sm:$0xff] %vm1689, %v1507
      %1709 = vst.msk [vmem:[%s280 + $0x98] sm:$0xff] %vm1689, %v1510
      %1710 = vst.msk [vmem:[%s280 + $0xa0] sm:$0xff] %vm1689, %v1515
      %1711 = vst.msk [vmem:[%s280 + $0xa8] sm:$0xff] %vm1689, %v1518
      %1712 = vst.msk [vmem:[%s280 + $0xb0] sm:$0xff] %vm1689, %v1523
      %1713 = vst.msk [vmem:[%s280 + $0xb8] sm:$0xff] %vm1689, %v1526
      %1714 = vst.msk [vmem:[%s280 + $0xc0] sm:$0xff] %vm1689, %v1531
      %1715 = vst.msk [vmem:[%s280 + $0xc8] sm:$0xff] %vm1689, %v1534
      %1716 = vst.msk [vmem:[%s280 + $0xd0] sm:$0xff] %vm1689, %v1539
      %1717 = vst.msk [vmem:[%s280 + $0xd8] sm:$0xff] %vm1689, %v1542
      %1718 = vst.msk [vmem:[%s280 + $0xe0] sm:$0xff] %vm1689, %v1547
      %1719 = vst.msk [vmem:[%s280 + $0xe8] sm:$0xff] %vm1689, %v1550
      %1720 = vst.msk [vmem:[%s280 + $0xf0] sm:$0xff] %vm1689, %v1555
      %1721 = vst.msk [vmem:[%s280 + $0xf8] sm:$0xff] %vm1689, %v1558
      %1722 = vst.msk [vmem:[%s280 + $0x100] sm:$0xff] %vm1689, %v1563
      %1723 = vst.msk [vmem:[%s280 + $0x108] sm:$0xff] %vm1689, %v1566
      %1724 = vst.msk [vmem:[%s280 + $0x110] sm:$0xff] %vm1689, %v1571
      %1725 = vst.msk [vmem:[%s280 + $0x118] sm:$0xff] %vm1689, %v1574
      %1726 = vst.msk [vmem:[%s280 + $0x120] sm:$0xff] %vm1689, %v1579
      %1727 = vst.msk [vmem:[%s280 + $0x128] sm:$0xff] %vm1689, %v1582
      %1728 = vst.msk [vmem:[%s280 + $0x130] sm:$0xff] %vm1689, %v1587
      %1729 = vst.msk [vmem:[%s280 + $0x138] sm:$0xff] %vm1689, %v1590
      %1730 = vst.msk [vmem:[%s280 + $0x140] sm:$0xff] %vm1689, %v1595
      %1731 = vst.msk [vmem:[%s280 + $0x148] sm:$0xff] %vm1689, %v1598
      %1732 = vst.msk [vmem:[%s280 + $0x150] sm:$0xff] %vm1689, %v1603
      %1733 = vst.msk [vmem:[%s280 + $0x158] sm:$0xff] %vm1689, %v1606
      %1734 = vst.msk [vmem:[%s280 + $0x160] sm:$0xff] %vm1689, %v1611
      %1735 = vst.msk [vmem:[%s280 + $0x168] sm:$0xff] %vm1689, %v1614
      %1736 = vst.msk [vmem:[%s280 + $0x170] sm:$0xff] %vm1689, %v1619
      %1737 = vst.msk [vmem:[%s280 + $0x178] sm:$0xff] %vm1689, %v1622
      %1738 = vst.msk [vmem:[%s280 + $0x180] sm:$0xff] %vm1689, %v1627
      %1739 = vst.msk [vmem:[%s280 + $0x188] sm:$0xff] %vm1689, %v1630
      %1740 = vst.msk [vmem:[%s280 + $0x190] sm:$0xff] %vm1689, %v1635
      %1741 = vst.msk [vmem:[%s280 + $0x198] sm:$0xff] %vm1689, %v1638
      %1742 = vst.msk [vmem:[%s280 + $0x1a0] sm:$0xff] %vm1689, %v1643
      %1743 = vst.msk [vmem:[%s280 + $0x1a8] sm:$0xff] %vm1689, %v1646
      %1744 = vst.msk [vmem:[%s280 + $0x1b0] sm:$0xff] %vm1689, %v1651
      %1745 = vst.msk [vmem:[%s280 + $0x1b8] sm:$0xff] %vm1689, %v1654
      %1746 = vst.msk [vmem:[%s280 + $0x1c0] sm:$0xff] %vm1689, %v1659
      %1747 = vst.msk [vmem:[%s280 + $0x1c8] sm:$0xff] %vm1689, %v1662
      %1748 = vst.msk [vmem:[%s280 + $0x1d0] sm:$0xff] %vm1689, %v1667
      %1749 = vst.msk [vmem:[%s280 + $0x1d8] sm:$0xff] %vm1689, %v1670
      %1750 = vst.msk [vmem:[%s280 + $0x1e0] sm:$0xff] %vm1689, %v1675
      %1751 = vst.msk [vmem:[%s280 + $0x1e8] sm:$0xff] %vm1689, %v1678
      %1752 = vst.msk [vmem:[%s280 + $0x1f0] sm:$0xff] %vm1689, %v1683
      %1753 = vst.msk [vmem:[%s280 + $0x1f8] sm:$0xff] %vm1689, %v1686
      %s1754 = smul.u32 64, %s18
      %p1755 = scmp.lt.s32.totalorder %s1754, 127
      %s1756 = scalar_select %p1755, %s1754, 127
      %s1757 = smul.addr %s1756, 8
      %s1758 = scalar_lea.vmem %s7, %s1757
      // Predicated region
      $region49: #{qnetwork_forward.1} parent=47 // pred_check
        %p1759 = pneg %p188
      $region50: #{qnetwork_forward.1} parent=47 // pred_check_branch
        %1761 = sbr.rel (%p1759) target = $region52
      $region51: #{qnetwork_forward.1} parent=47 // pred_region
        %s1762 = smul.u32 64, %s18
      $region52: #{qnetwork_forward.1} parent=47 // pred_fallthru
        _
    $region48: #{qnetwork_forward.1} parent=5 // pred_fallthru
      _
    %p1763 = scmp.le.s32.totalorder 2, %s13
    // Predicated region
    $region53: #{qnetwork_forward.1} parent=5 // pred_check
      %p1764 = pneg %p1763
    $region54: #{qnetwork_forward.1} parent=5 // pred_check_branch
      %1766 = sbr.rel (%p1764) target = $region56
    $region55: #{qnetwork_forward.1} parent=5 // pred_region
      %s1767 = ssub.s32 %s13, 2
      // Predicated region
      $region57: #{qnetwork_forward.1} parent=55 // pred_check
        %p1768 = pneg %p194
      $region58: #{qnetwork_forward.1} parent=55 // pred_check_branch
        %1770 = sbr.rel (%p1768) target = $region60
      $region59: #{qnetwork_forward.1} parent=55 // pred_region
        %s1771 = smul.u32 64, %s19
        %p1772 = scmp.lt.s32.totalorder %s1771, 127
        %s1773 = scalar_select %p1772, %s1771, 127
        %s1774 = smul.addr %s1773, 8
        %s1775 = scalar_lea.vmem %s7, %s1774
      $region60: #{qnetwork_forward.1} parent=55 // pred_fallthru
        _
    $region56: #{qnetwork_forward.1} parent=5 // pred_fallthru
      _
  $region6: #{qnetwork_forward.1} parent=0 // loop_footer
    %s17 = sadd.s32 1, %s13
  $region7: #{qnetwork_forward.1} parent=0 // loop_footer_branch
    %12 = sbr.rel target = $region3
  $region8: #{qnetwork_forward.1} parent=0 // loop_exit
    _

</llo_original>
